<compile_context>
chip_gen: v7x
topology: tpu7x:2x2x1
jax: 0.10.0
libtpu: 0.0.40
codegen_flags: <defaults>
</compile_context>

<pallas_src>
import functools

import jax
import jax.numpy as jnp
from jax.experimental import pallas as pl
from jax.experimental.pallas import tpu as pltpu

LEAKY_SLOPE = 0.01


def _leaky_relu(x):
    return jnp.where(x > 0, x, LEAKY_SLOPE * x)


def _round_up(x, m):
    return ((x + m - 1) // m) * m


def rslogic2_kernel(ui0_ref, users_ref, gu_h_ref, gi_h_ref,
                    gamma_u_ref, gamma_i_ref,
                    w1u_ref, w1i_ref, b1_ref, w2_ref, b2_ref,
                    gu_star_ref, gui_ref,
                    acc_ref, cnt_ref):
    mi = pl.program_id(0)

    @pl.when(mi == 0)
    def _init():
        acc_ref[...] = jnp.zeros_like(acc_ref)
        cnt_ref[...] = jnp.zeros_like(cnt_ref)

    w1u = w1u_ref[...]
    w1i = w1i_ref[...]
    w2 = w2_ref[...]
    b1 = b1_ref[...]
    b2 = b2_ref[...]
    mxu_dtype = w2.dtype

    # ---- per-interaction MLP on this M tile: [tile_m, K] (MXU, f32 accum) ----
    h = (jnp.dot(gu_h_ref[...], w1u, preferred_element_type=jnp.float32)
         + jnp.dot(gi_h_ref[...], w1i, preferred_element_type=jnp.float32)
         + b1)
    h = _leaky_relu(h)
    rep = jnp.dot(h.astype(mxu_dtype), w2,
                  preferred_element_type=jnp.float32) + b2

    # ---- membership mask tile rebuilt on the VPU (no [B, M] HBM traffic) ----
    # users: [B, 1] int32, ui0 tile: [1, tile_m] int32  ->  [B, tile_m] 0/1
    eq = users_ref[...] == ui0_ref[...]
    cnt_ref[...] += jnp.sum(eq.astype(jnp.float32), axis=1, keepdims=True)
    acc_ref[...] += jnp.dot(eq.astype(mxu_dtype), rep.astype(mxu_dtype),
                            preferred_element_type=jnp.float32)

    # ---- finalize: batch MLP runs exactly once; outputs written once ----
    @pl.when(mi == pl.num_programs(0) - 1)
    def _finalize():
        hb = (jnp.dot(gamma_u_ref[...], w1u, preferred_element_type=jnp.float32)
              + jnp.dot(gamma_i_ref[...], w1i, preferred_element_type=jnp.float32)
              + b1)
        hb = _leaky_relu(hb)
        gui = jnp.dot(hb.astype(mxu_dtype), w2,
                      preferred_element_type=jnp.float32) + b2
        gui_ref[...] = gui
        # NOTE: a batch user with zero history rows yields cnt==0 -> inf/NaN,
        # matching torch.mean over an empty tensor (documented precondition).
        inv = pl.reciprocal(cnt_ref[...], approx=True)
        gu_star_ref[...] = acc_ref[...] * inv


def rslogic2_forward(users, items, ui, Gu, Gi, W1, b1, W2, b2,
                     *, tile_m=4096, mxu_dtype=jnp.bfloat16):
    """users, items: [B] int; ui: [2, M] int; Gu: [U,K] f32; Gi: [I,K] f32.
    W1: [2K, K] (pre-transposed, i.e. torch weight.T), b1: [K], W2: [K, K], b2: [K].
    Returns (xui [B], gu_star [B,K], gamma_i [B,K]) in f32."""
    users = users.astype(jnp.int32)
    items = items.astype(jnp.int32)
    ui0 = ui[0].astype(jnp.int32)
    ui1 = ui[1].astype(jnp.int32)

    B = users.shape[0]
    M = ui0.shape[0]
    K = Gu.shape[1]
    dsize = jnp.dtype(mxu_dtype).itemsize

    # --- glue indexing (XLA gathers); MXU operands cast to bf16 ---
    gu_hist = Gu[ui0].astype(mxu_dtype)          # [M, K]
    gi_hist = Gi[ui1].astype(mxu_dtype)          # [M, K]
    gamma_u = Gu[users].astype(mxu_dtype)        # [B, K]
    gamma_i_f32 = Gi[items]                      # [B, K] (returned untouched)
    gamma_i = gamma_i_f32.astype(mxu_dtype)

    w1u = W1[:K, :].astype(mxu_dtype)            # [K, K]  (split of the 2K Linear1)
    w1i = W1[K:, :].astype(mxu_dtype)            # [K, K]
    w2 = W2.astype(mxu_dtype)                    # [K, K]
    b1r = b1.reshape(1, K).astype(jnp.float32)
    b2r = b2.reshape(1, K).astype(jnp.float32)

    # --- M tiling: tile_m multiple of 128 (lane axis of ui0, sublane of hist) ---
    tile_m = max(128, min(_round_up(tile_m, 128), _round_up(M, 128)))
    m_pad = _round_up(M, tile_m)
    pad = m_pad - M
    if pad:
        # sentinel user id -1 never matches a real user -> padded rows inert
        ui0 = jnp.pad(ui0, (0, pad), constant_values=-1)
        gu_hist = jnp.pad(gu_hist, ((0, pad), (0, 0)))
        gi_hist = jnp.pad(gi_hist, ((0, pad), (0, 0)))
    ui0_2d = ui0.reshape(1, m_pad)
    users_2d = users.reshape(B, 1)

    grid = (m_pad // tile_m,)

    # --- explicit VMEM budget (double-buffered M-tile inputs + residents),
    #     kept well under v7x's 64 MiB physical VMEM ---
    tile_bytes = tile_m * (2 * K * dsize + 4)              # gu+gi+ui0 per tile
    resident = (3 * K * K + 2 * B * K) * dsize + 2 * K * 4 + B * 4
    out_bytes = 2 * B * K * 4
    scratch_bytes = (B * K + B) * 4
    vmem_limit = int(max(16 * 2**20,
                         min(48 * 2**20,
                             2 * (2 * tile_bytes + resident + 2 * out_bytes)
                             + scratch_bytes + 2 * 2**20)))

    cost = pl.CostEstimate(
        flops=2 * (3 * K * K * (m_pad + B) + B * m_pad * K),
        transcendentals=B,
        bytes_accessed=(2 * m_pad * K * dsize + m_pad * 4
                        + (3 * K * K + 2 * B * K) * dsize
                        + 2 * K * 4 + B * 4 + out_bytes),
    )

    grid_spec = pltpu.PrefetchScalarGridSpec(
        num_scalar_prefetch=0,
        grid=grid,
        in_specs=[
            pl.BlockSpec((1, tile_m), lambda mi: (0, mi)),   # ui0 (history user ids)
            pl.BlockSpec((B, 1), lambda mi: (0, 0)),         # batch users
            pl.BlockSpec((tile_m, K), lambda mi: (mi, 0)),   # Gu[ui0] tile
            pl.BlockSpec((tile_m, K), lambda mi: (mi, 0)),   # Gi[ui1] tile
            pl.BlockSpec((B, K), lambda mi: (0, 0)),         # gamma_u (resident)
            pl.BlockSpec((B, K), lambda mi: (0, 0)),         # gamma_i (resident)
            pl.BlockSpec((K, K), lambda mi: (0, 0)),         # W1u (resident)
            pl.BlockSpec((K, K), lambda mi: (0, 0)),         # W1i (resident)
            pl.BlockSpec((1, K), lambda mi: (0, 0)),         # b1
            pl.BlockSpec((K, K), lambda mi: (0, 0)),         # W2 (resident)
            pl.BlockSpec((1, K), lambda mi: (0, 0)),         # b2
        ],
        out_specs=[
            pl.BlockSpec((B, K), lambda mi: (0, 0)),         # gu_star
            pl.BlockSpec((B, K), lambda mi: (0, 0)),         # gui
        ],
        scratch_shapes=[
            pltpu.VMEM((B, K), jnp.float32),                 # masked-sum accumulator
            pltpu.VMEM((B, 1), jnp.float32),                 # per-user counts
        ],
    )

    gu_star, gui = pl.pallas_call(
        rslogic2_kernel,
        out_shape=(
            jax.ShapeDtypeStruct((B, K), jnp.float32),
            jax.ShapeDtypeStruct((B, K), jnp.float32),
        ),
        grid_spec=grid_spec,
        compiler_params=pltpu.CompilerParams(
            dimension_semantics=("arbitrary",),   # M axis is a reduction
            vmem_limit_bytes=vmem_limit,
        ),
        cost_estimate=cost,
    )(ui0_2d, users_2d, gu_hist, gi_hist, gamma_u, gamma_i,
      w1u, w1i, b1r, w2, b2r)

    # width-1 reduction kept outside the kernel (keeps in-kernel stores lane-dense)
    xui = jnp.sum(gu_star * gui, axis=1)
    return xui, gu_star, gamma_i_f32


# ---------------------------------------------------------------------------
# pure-jnp references for the sanity check
# ---------------------------------------------------------------------------
def _reference_forward_f32(users, items, ui, Gu, Gi, W1, b1, W2, b2):
    """Exact torch-equivalent f32 math."""
    def mlp(x):
        h = _leaky_relu(x @ W1 + b1)
        return h @ W2 + b2

    rep = mlp(jnp.concatenate([Gu[ui[0]], Gi[ui[1]]], axis=1))
    mask = (users[:, None] == ui[0][None, :]).astype(jnp.float32)
    gu_star = (mask @ rep) / jnp.sum(mask, axis=1, keepdims=True)
    gui = mlp(jnp.concatenate([Gu[users], Gi[items]], axis=1))
    xui = jnp.sum(gu_star * gui, axis=1)
    return xui, gu_star, Gi[items]


def _reference_forward_mxu(users, items, ui, Gu, Gi, W1, b1, W2, b2,
                           mxu_dtype=jnp.bfloat16):
    """Mirrors the kernel's dtype handling (bf16 MXU inputs, f32 accumulation)."""
    K = Gu.shape[1]
    w1u = W1[:K].astype(mxu_dtype)
    w1i = W1[K:].astype(mxu_dtype)
    w2 = W2.astype(mxu_dtype)

    def mlp(u, i):
        h = (jnp.dot(u.astype(mxu_dtype), w1u, preferred_element_type=jnp.float32)
             + jnp.dot(i.astype(mxu_dtype), w1i, preferred_element_type=jnp.float32)
             + b1)
        h = _leaky_relu(h)
        return jnp.dot(h.astype(mxu_dtype), w2,
                       preferred_element_type=jnp.float32) + b2

    rep = mlp(Gu[ui[0]], Gi[ui[1]])
    mask = users[:, None] == ui[0][None, :]
    counts = jnp.sum(mask.astype(jnp.float32), axis=1, keepdims=True)
    sums = jnp.dot(mask.astype(mxu_dtype), rep.astype(mxu_dtype),
                   preferred_element_type=jnp.float32)
    gu_star = sums / counts
    gui = mlp(Gu[users], Gi[items])
    xui = jnp.sum(gu_star * gui, axis=1)
    return xui, gu_star, Gi[items]


if __name__ == "__main__":
    num_users = 16
    num_items = 32
    embed_k = 128            # lane-dense outputs (128-lane axis)
    batch = 8
    hist_per_user = 20
    M = num_users * hist_per_user   # 320 -> padded to 384 -> 3 M-tiles at tile_m=128

    key = jax.random.PRNGKey(0)
    k_gu, k_gi, k_w1, k_w2, k_b1, k_b2, k_items = jax.random.split(key, 7)

    def xavier(k, shape):
        fan_in, fan_out = shape
        lim = (6.0 / (fan_in + fan_out)) ** 0.5
        return jax.random.uniform(k, shape, jnp.float32, -lim, lim)

    Gu = xavier(k_gu, (num_users, embed_k))
    Gi = xavier(k_gi, (num_items, embed_k))
    W1 = xavier(k_w1, (2 * embed_k, embed_k))    # [in, out] == torch Linear1.weight.T
    b1 = jax.random.uniform(k_b1, (embed_k,), jnp.float32, -0.1, 0.1)
    W2 = xavier(k_w2, (embed_k, embed_k))        # [in, out] == torch Linear2.weight.T
    b2 = jax.random.uniform(k_b2, (embed_k,), jnp.float32, -0.1, 0.1)

    # deterministic interaction table ui [2, M]; every batch user has history
    ui_users = jnp.repeat(jnp.arange(num_users, dtype=jnp.int32), hist_per_user)
    ui_items = (ui_users * 7 + jnp.tile(jnp.arange(hist_per_user, dtype=jnp.int32),
                                        num_users)) % num_items
    ui = jnp.stack([ui_users, ui_items], axis=0)

    users = jnp.arange(batch, dtype=jnp.int32)
    items = jax.random.randint(k_items, (batch,), 0, num_items, dtype=jnp.int32)

    # small tile_m so the demo exercises multi-tile accumulation over M
    fwd = jax.jit(functools.partial(rslogic2_forward, tile_m=128))
    xui, gu_star, gamma_i = fwd(users, items, ui, Gu, Gi, W1, b1, W2, b2)
    jax.block_until_ready((xui, gu_star, gamma_i))

    # tight check vs a reference using the identical bf16-MXU / f32-accum math
    xui_m, gu_star_m, gamma_i_m = _reference_forward_mxu(
        users, items, ui, Gu, Gi, W1, b1, W2, b2)
    assert jnp.allclose(xui, xui_m, atol=1e-2, rtol=1e-2)
    assert jnp.allclose(gu_star, gu_star_m, atol=1e-2, rtol=1e-2)
    assert jnp.allclose(gamma_i, gamma_i_m)

    # loose check vs the exact f32 (torch-equivalent) math
    xui_r, gu_star_r, _ = _reference_forward_f32(
        users, items, ui, Gu, Gi, W1, b1, W2, b2)
    assert jnp.allclose(xui, xui_r, atol=5e-2, rtol=5e-2)
    assert jnp.allclose(gu_star, gu_star_r, atol=5e-2, rtol=5e-2)

    print("KERNEL_OK")
</pallas_src>

<mosaic_0001>
module attributes {stable_mosaic.version = 11 : i64} {
  func.func @rslogic2_kernel(%arg0: i32, %arg1: memref<1x128xi32, #tpu.memory_space<vmem>>, %arg2: memref<8x1xi32, #tpu.memory_space<vmem>>, %arg3: memref<128x128xbf16, #tpu.memory_space<vmem>>, %arg4: memref<128x128xbf16, #tpu.memory_space<vmem>>, %arg5: memref<8x128xbf16, #tpu.memory_space<vmem>>, %arg6: memref<8x128xbf16, #tpu.memory_space<vmem>>, %arg7: memref<128x128xbf16, #tpu.memory_space<vmem>>, %arg8: memref<128x128xbf16, #tpu.memory_space<vmem>>, %arg9: memref<1x128xf32, #tpu.memory_space<vmem>>, %arg10: memref<128x128xbf16, #tpu.memory_space<vmem>>, %arg11: memref<1x128xf32, #tpu.memory_space<vmem>>, %arg12: memref<8x128xf32, #tpu.memory_space<vmem>>, %arg13: memref<8x128xf32, #tpu.memory_space<vmem>>, %arg14: memref<8x128xf32, #tpu.memory_space<vmem>>, %arg15: memref<8x1xf32, #tpu.memory_space<vmem>>) attributes {dimension_semantics = [#tpu.dimension_semantics<arbitrary>], iteration_bounds = array<i64: 3>, scalar_prefetch = 0 : i64, scratch_operands = 2 : i64, tpu.core_type = #tpu.core_type<tc>, window_params = [{transform_indices = @transform_0, window_bounds = array<i64: 1, 128>}, {pipeline_mode = #tpu.pipeline_mode<synchronous>, transform_indices = @transform_1, window_bounds = array<i64: 8, 1>}, {transform_indices = @transform_2, window_bounds = array<i64: 128, 128>}, {transform_indices = @transform_3, window_bounds = array<i64: 128, 128>}, {pipeline_mode = #tpu.pipeline_mode<synchronous>, transform_indices = @transform_4, window_bounds = array<i64: 8, 128>}, {pipeline_mode = #tpu.pipeline_mode<synchronous>, transform_indices = @transform_5, window_bounds = array<i64: 8, 128>}, {pipeline_mode = #tpu.pipeline_mode<synchronous>, transform_indices = @transform_6, window_bounds = array<i64: 128, 128>}, {pipeline_mode = #tpu.pipeline_mode<synchronous>, transform_indices = @transform_7, window_bounds = array<i64: 128, 128>}, {pipeline_mode = #tpu.pipeline_mode<synchronous>, transform_indices = @transform_8, window_bounds = array<i64: 1, 128>}, {pipeline_mode = #tpu.pipeline_mode<synchronous>, transform_indices = @transform_9, window_bounds = array<i64: 128, 128>}, {pipeline_mode = #tpu.pipeline_mode<synchronous>, transform_indices = @transform_10, window_bounds = array<i64: 1, 128>}, {pipeline_mode = #tpu.pipeline_mode<synchronous>, transform_indices = @transform_11, window_bounds = array<i64: 8, 128>}, {pipeline_mode = #tpu.pipeline_mode<synchronous>, transform_indices = @transform_12, window_bounds = array<i64: 8, 128>}]} {
    %c0_i32 = arith.constant 0 : i32
    %0 = arith.cmpi eq, %arg0, %c0_i32 : i32
    %1 = arith.extui %0 : i1 to i32
    %c0_i32_0 = arith.constant 0 : i32
    %2 = arith.cmpi ne, %1, %c0_i32_0 : i32
    scf.if %2 {
      %cst_33 = arith.constant 0.000000e+00 : f32
      %47 = vector.broadcast %cst_33 : f32 to vector<8x128xf32>
      %c0_34 = arith.constant 0 : index
      %c0_35 = arith.constant 0 : index
      %48 = vector.load %arg14[%c0_34, %c0_35] : memref<8x128xf32, #tpu.memory_space<vmem>>, vector<8x128xf32>
      tpu.vector_store %arg14[%c0_34, %c0_35], %47 {strides = array<i32>} : memref<8x128xf32, #tpu.memory_space<vmem>>, vector<8x128xf32>,
      %cst_36 = arith.constant 0.000000e+00 : f32
      %49 = vector.broadcast %cst_36 : f32 to vector<8x1xf32>
      %c0_37 = arith.constant 0 : index
      %c0_38 = arith.constant 0 : index
      %50 = vector.load %arg15[%c0_37, %c0_38] : memref<8x1xf32, #tpu.memory_space<vmem>>, vector<8x1xf32>
      tpu.vector_store %arg15[%c0_37, %c0_38], %49 {strides = array<i32>} : memref<8x1xf32, #tpu.memory_space<vmem>>, vector<8x1xf32>,
    } else {
    }
    %c0 = arith.constant 0 : index
    %c0_1 = arith.constant 0 : index
    %3 = vector.load %arg7[%c0, %c0_1] : memref<128x128xbf16, #tpu.memory_space<vmem>>, vector<128x128xbf16>
    %c0_2 = arith.constant 0 : index
    %c0_3 = arith.constant 0 : index
    %4 = vector.load %arg8[%c0_2, %c0_3] : memref<128x128xbf16, #tpu.memory_space<vmem>>, vector<128x128xbf16>
    %c0_4 = arith.constant 0 : index
    %c0_5 = arith.constant 0 : index
    %5 = vector.load %arg10[%c0_4, %c0_5] : memref<128x128xbf16, #tpu.memory_space<vmem>>, vector<128x128xbf16>
    %c0_6 = arith.constant 0 : index
    %c0_7 = arith.constant 0 : index
    %6 = vector.load %arg9[%c0_6, %c0_7] : memref<1x128xf32, #tpu.memory_space<vmem>>, vector<1x128xf32>
    %c0_8 = arith.constant 0 : index
    %c0_9 = arith.constant 0 : index
    %7 = vector.load %arg11[%c0_8, %c0_9] : memref<1x128xf32, #tpu.memory_space<vmem>>, vector<1x128xf32>
    %c0_10 = arith.constant 0 : index
    %c0_11 = arith.constant 0 : index
    %8 = vector.load %arg3[%c0_10, %c0_11] : memref<128x128xbf16, #tpu.memory_space<vmem>>, vector<128x128xbf16>
    %cst = arith.constant dense<0.000000e+00> : vector<128x128xf32>
    %9 = tpu.matmul %8, %3, %cst {dimension_numbers = #tpu.dot_dimension_numbers<[1], [0], [0], [1], [0, 0, 1, 1], [], []>} : vector<128x128xbf16>, vector<128x128xbf16>, vector<128x128xf32> -> vector<128x128xf32>
    %c0_12 = arith.constant 0 : index
    %c0_13 = arith.constant 0 : index
    %10 = vector.load %arg4[%c0_12, %c0_13] : memref<128x128xbf16, #tpu.memory_space<vmem>>, vector<128x128xbf16>
    %cst_14 = arith.constant dense<0.000000e+00> : vector<128x128xf32>
    %11 = tpu.matmul %10, %4, %cst_14 {dimension_numbers = #tpu.dot_dimension_numbers<[1], [0], [0], [1], [0, 0, 1, 1], [], []>} : vector<128x128xbf16>, vector<128x128xbf16>, vector<128x128xf32> -> vector<128x128xf32>
    %12 = arith.addf %9, %11 : vector<128x128xf32>
    %13 = vector.broadcast %6 : vector<1x128xf32> to vector<128x128xf32>
    %14 = arith.addf %12, %13 : vector<128x128xf32>
    %cst_15 = arith.constant 0.000000e+00 : f32
    %15 = vector.broadcast %cst_15 : f32 to vector<128x128xf32>
    %16 = arith.cmpf ogt, %14, %15 : vector<128x128xf32>
    %cst_16 = arith.constant 0.00999999977 : f32
    %17 = vector.broadcast %cst_16 : f32 to vector<128x128xf32>
    %18 = arith.mulf %17, %14 : vector<128x128xf32>
    %19 = arith.select %16, %14, %18 : vector<128x128xi1>, vector<128x128xf32>
    %20 = arith.truncf %19 : vector<128x128xf32> to vector<128x128xbf16>
    %cst_17 = arith.constant dense<0.000000e+00> : vector<128x128xf32>
    %21 = tpu.matmul %20, %5, %cst_17 {dimension_numbers = #tpu.dot_dimension_numbers<[1], [0], [0], [1], [0, 0, 1, 1], [], []>} : vector<128x128xbf16>, vector<128x128xbf16>, vector<128x128xf32> -> vector<128x128xf32>
    %22 = vector.broadcast %7 : vector<1x128xf32> to vector<128x128xf32>
    %23 = arith.addf %21, %22 : vector<128x128xf32>
    %c0_18 = arith.constant 0 : index
    %c0_19 = arith.constant 0 : index
    %24 = vector.load %arg2[%c0_18, %c0_19] : memref<8x1xi32, #tpu.memory_space<vmem>>, vector<8x1xi32>
    %c0_20 = arith.constant 0 : index
    %c0_21 = arith.constant 0 : index
    %25 = vector.load %arg1[%c0_20, %c0_21] : memref<1x128xi32, #tpu.memory_space<vmem>>, vector<1x128xi32>
    %26 = vector.broadcast %24 : vector<8x1xi32> to vector<8x128xi32>
    %27 = vector.broadcast %25 : vector<1x128xi32> to vector<8x128xi32>
    %28 = arith.cmpi eq, %26, %27 : vector<8x128xi32>
    %c0_22 = arith.constant 0 : index
    %c0_23 = arith.constant 0 : index
    %29 = vector.load %arg15[%c0_22, %c0_23] : memref<8x1xf32, #tpu.memory_space<vmem>>, vector<8x1xf32>
    %30 = arith.extui %28 : vector<8x128xi1> to vector<8x128xi32>
    %31 = arith.sitofp %30 : vector<8x128xi32> to vector<8x128xf32>
    %cst_24 = arith.constant dense<0.000000e+00> : vector<8xf32>
    %32 = vector.multi_reduction <add>, %31, %cst_24 [1] : vector<8x128xf32> to vector<8xf32>
    %33 = vector.shape_cast %32 : vector<8xf32> to vector<8x1xf32>
    %34 = arith.addf %29, %33 : vector<8x1xf32>
    %c0_25 = arith.constant 0 : index
    %c0_26 = arith.constant 0 : index
    %35 = vector.load %arg15[%c0_25, %c0_26] : memref<8x1xf32, #tpu.memory_space<vmem>>, vector<8x1xf32>
    tpu.vector_store %arg15[%c0_25, %c0_26], %34 {strides = array<i32>} : memref<8x1xf32, #tpu.memory_space<vmem>>, vector<8x1xf32>,
    %c0_27 = arith.constant 0 : index
    %c0_28 = arith.constant 0 : index
    %36 = vector.load %arg14[%c0_27, %c0_28] : memref<8x128xf32, #tpu.memory_space<vmem>>, vector<8x128xf32>
    %37 = arith.extui %28 : vector<8x128xi1> to vector<8x128xi32>
    %38 = arith.sitofp %37 : vector<8x128xi32> to vector<8x128xf32>
    %39 = arith.truncf %38 : vector<8x128xf32> to vector<8x128xbf16>
    %40 = arith.truncf %23 : vector<128x128xf32> to vector<128x128xbf16>
    %cst_29 = arith.constant dense<0.000000e+00> : vector<8x128xf32>
    %41 = tpu.matmul %39, %40, %cst_29 {dimension_numbers = #tpu.dot_dimension_numbers<[1], [0], [0], [1], [0, 0, 1, 1], [], []>} : vector<8x128xbf16>, vector<128x128xbf16>, vector<8x128xf32> -> vector<8x128xf32>
    %42 = arith.addf %36, %41 : vector<8x128xf32>
    %c0_30 = arith.constant 0 : index
    %c0_31 = arith.constant 0 : index
    %43 = vector.load %arg14[%c0_30, %c0_31] : memref<8x128xf32, #tpu.memory_space<vmem>>, vector<8x128xf32>
    tpu.vector_store %arg14[%c0_30, %c0_31], %42 {strides = array<i32>} : memref<8x128xf32, #tpu.memory_space<vmem>>, vector<8x128xf32>,
    %c2_i32 = arith.constant 2 : i32
    %44 = arith.cmpi eq, %arg0, %c2_i32 : i32
    %45 = arith.extui %44 : i1 to i32
    %c0_i32_32 = arith.constant 0 : i32
    %46 = arith.cmpi ne, %45, %c0_i32_32 : i32
    scf.if %46 {
      %c0_33 = arith.constant 0 : index
      %c0_34 = arith.constant 0 : index
      %47 = vector.load %arg5[%c0_33, %c0_34] : memref<8x128xbf16, #tpu.memory_space<vmem>>, vector<8x128xbf16>
      %cst_35 = arith.constant dense<0.000000e+00> : vector<8x128xf32>
      %48 = tpu.matmul %47, %3, %cst_35 {dimension_numbers = #tpu.dot_dimension_numbers<[1], [0], [0], [1], [0, 0, 1, 1], [], []>} : vector<8x128xbf16>, vector<128x128xbf16>, vector<8x128xf32> -> vector<8x128xf32>
      %c0_36 = arith.constant 0 : index
      %c0_37 = arith.constant 0 : index
      %49 = vector.load %arg6[%c0_36, %c0_37] : memref<8x128xbf16, #tpu.memory_space<vmem>>, vector<8x128xbf16>
      %cst_38 = arith.constant dense<0.000000e+00> : vector<8x128xf32>
      %50 = tpu.matmul %49, %4, %cst_38 {dimension_numbers = #tpu.dot_dimension_numbers<[1], [0], [0], [1], [0, 0, 1, 1], [], []>} : vector<8x128xbf16>, vector<128x128xbf16>, vector<8x128xf32> -> vector<8x128xf32>
      %51 = arith.addf %48, %50 : vector<8x128xf32>
      %52 = vector.broadcast %6 : vector<1x128xf32> to vector<8x128xf32>
      %53 = arith.addf %51, %52 : vector<8x128xf32>
      %cst_39 = arith.constant 0.000000e+00 : f32
      %54 = vector.broadcast %cst_39 : f32 to vector<8x128xf32>
      %55 = arith.cmpf ogt, %53, %54 : vector<8x128xf32>
      %cst_40 = arith.constant 0.00999999977 : f32
      %56 = vector.broadcast %cst_40 : f32 to vector<8x128xf32>
      %57 = arith.mulf %56, %53 : vector<8x128xf32>
      %58 = arith.select %55, %53, %57 : vector<8x128xi1>, vector<8x128xf32>
      %59 = arith.truncf %58 : vector<8x128xf32> to vector<8x128xbf16>
      %cst_41 = arith.constant dense<0.000000e+00> : vector<8x128xf32>
      %60 = tpu.matmul %59, %5, %cst_41 {dimension_numbers = #tpu.dot_dimension_numbers<[1], [0], [0], [1], [0, 0, 1, 1], [], []>} : vector<8x128xbf16>, vector<128x128xbf16>, vector<8x128xf32> -> vector<8x128xf32>
      %61 = vector.broadcast %7 : vector<1x128xf32> to vector<8x128xf32>
      %62 = arith.addf %60, %61 : vector<8x128xf32>
      %c0_42 = arith.constant 0 : index
      %c0_43 = arith.constant 0 : index
      %63 = vector.load %arg13[%c0_42, %c0_43] : memref<8x128xf32, #tpu.memory_space<vmem>>, vector<8x128xf32>
      tpu.vector_store %arg13[%c0_42, %c0_43], %62 {strides = array<i32>} : memref<8x128xf32, #tpu.memory_space<vmem>>, vector<8x128xf32>,
      %c0_44 = arith.constant 0 : index
      %c0_45 = arith.constant 0 : index
      %64 = vector.load %arg15[%c0_44, %c0_45] : memref<8x1xf32, #tpu.memory_space<vmem>>, vector<8x1xf32>
      %65 = tpu.reciprocal %64 {approx = true} : vector<8x1xf32> -> vector<8x1xf32>
      %c0_46 = arith.constant 0 : index
      %c0_47 = arith.constant 0 : index
      %66 = vector.load %arg14[%c0_46, %c0_47] : memref<8x128xf32, #tpu.memory_space<vmem>>, vector<8x128xf32>
      %67 = vector.broadcast %65 : vector<8x1xf32> to vector<8x128xf32>
      %68 = arith.mulf %66, %67 : vector<8x128xf32>
      %c0_48 = arith.constant 0 : index
      %c0_49 = arith.constant 0 : index
      %69 = vector.load %arg12[%c0_48, %c0_49] : memref<8x128xf32, #tpu.memory_space<vmem>>, vector<8x128xf32>
      tpu.vector_store %arg12[%c0_48, %c0_49], %68 {strides = array<i32>} : memref<8x128xf32, #tpu.memory_space<vmem>>, vector<8x128xf32>,
    } else {
    }
    return
  }
  func.func @transform_0(%arg0: i32) -> (i32, i32) {
    %c0_i32 = arith.constant 0 : i32
    %c0_i32_0 = arith.constant 0 : i32
    return %c0_i32, %arg0 : i32, i32
  }
  func.func @transform_1(%arg0: i32) -> (i32, i32) {
    %c0_i32 = arith.constant 0 : i32
    %c0_i32_0 = arith.constant 0 : i32
    %c0_i32_1 = arith.constant 0 : i32
    return %c0_i32, %c0_i32_0 : i32, i32
  }
  func.func @transform_2(%arg0: i32) -> (i32, i32) {
    %c0_i32 = arith.constant 0 : i32
    %c0_i32_0 = arith.constant 0 : i32
    return %arg0, %c0_i32 : i32, i32
  }
  func.func @transform_3(%arg0: i32) -> (i32, i32) {
    %c0_i32 = arith.constant 0 : i32
    %c0_i32_0 = arith.constant 0 : i32
    return %arg0, %c0_i32 : i32, i32
  }
  func.func @transform_4(%arg0: i32) -> (i32, i32) {
    %c0_i32 = arith.constant 0 : i32
    %c0_i32_0 = arith.constant 0 : i32
    %c0_i32_1 = arith.constant 0 : i32
    return %c0_i32, %c0_i32_0 : i32, i32
  }
  func.func @transform_5(%arg0: i32) -> (i32, i32) {
    %c0_i32 = arith.constant 0 : i32
    %c0_i32_0 = arith.constant 0 : i32
    %c0_i32_1 = arith.constant 0 : i32
    return %c0_i32, %c0_i32_0 : i32, i32
  }
  func.func @transform_6(%arg0: i32) -> (i32, i32) {
    %c0_i32 = arith.constant 0 : i32
    %c0_i32_0 = arith.constant 0 : i32
    %c0_i32_1 = arith.constant 0 : i32
    return %c0_i32, %c0_i32_0 : i32, i32
  }
  func.func @transform_7(%arg0: i32) -> (i32, i32) {
    %c0_i32 = arith.constant 0 : i32
    %c0_i32_0 = arith.constant 0 : i32
    %c0_i32_1 = arith.constant 0 : i32
    return %c0_i32, %c0_i32_0 : i32, i32
  }
  func.func @transform_8(%arg0: i32) -> (i32, i32) {
    %c0_i32 = arith.constant 0 : i32
    %c0_i32_0 = arith.constant 0 : i32
    %c0_i32_1 = arith.constant 0 : i32
    return %c0_i32, %c0_i32_0 : i32, i32
  }
  func.func @transform_9(%arg0: i32) -> (i32, i32) {
    %c0_i32 = arith.constant 0 : i32
    %c0_i32_0 = arith.constant 0 : i32
    %c0_i32_1 = arith.constant 0 : i32
    return %c0_i32, %c0_i32_0 : i32, i32
  }
  func.func @transform_10(%arg0: i32) -> (i32, i32) {
    %c0_i32 = arith.constant 0 : i32
    %c0_i32_0 = arith.constant 0 : i32
    %c0_i32_1 = arith.constant 0 : i32
    return %c0_i32, %c0_i32_0 : i32, i32
  }
  func.func @transform_11(%arg0: i32) -> (i32, i32) {
    %c0_i32 = arith.constant 0 : i32
    %c0_i32_0 = arith.constant 0 : i32
    %c0_i32_1 = arith.constant 0 : i32
    return %c0_i32, %c0_i32_0 : i32, i32
  }
  func.func @transform_12(%arg0: i32) -> (i32, i32) {
    %c0_i32 = arith.constant 0 : i32
    %c0_i32_0 = arith.constant 0 : i32
    %c0_i32_1 = arith.constant 0 : i32
    return %c0_i32, %c0_i32_0 : i32, i32
  }
}

</mosaic_0001>

<llo_original>
// kernel: rslogic2_forward.1
$region0: #{rslogic2_forward.1}
  #allocation0 [shape = 'u32[]', space=smem, size = 0x4, offset = 0x4, fixed_abs, tag = 'smem constant byte address 0x4 - core index']
  #allocation1 [shape = 'u32[144,128]{1,0:T(1,128)}', space=vmem, size = 0x12000, scoped, tag = 'internal scratch']
  #allocation2 [shape = 'f32[8,128]{1,0:T(8,128)}', space=vmem, size = 0x1000, scoped, tag = 'scratch operand']
  #allocation3 [shape = 'f32[8,1]{1,0:T(8,128)}', space=vmem, size = 0x1000, scoped, tag = 'scratch operand']
  %s0 = inlined_call_operand.vmem [shape: s32[1,384], index: 0, kind: input, shape index: {}]
  %s1 = inlined_call_operand.vmem [shape: s32[8,1], index: 1, kind: input, shape index: {}]
  %s2 = inlined_call_operand.vmem [shape: bf16[384,128], index: 2, kind: input, shape index: {}]
  %s3 = inlined_call_operand.vmem [shape: bf16[384,128], index: 3, kind: input, shape index: {}]
  %s4 = inlined_call_operand.vmem [shape: bf16[8,128], index: 4, kind: input, shape index: {}]
  %s5 = inlined_call_operand.vmem [shape: bf16[8,128], index: 5, kind: input, shape index: {}]
  %s6 = inlined_call_operand.vmem [shape: bf16[128,128], index: 6, kind: input, shape index: {}]
  %s7 = inlined_call_operand.vmem [shape: bf16[128,128], index: 7, kind: input, shape index: {}]
  %s8 = inlined_call_operand.vmem [shape: f32[1,128], index: 8, kind: input, shape index: {}]
  %s9 = inlined_call_operand.vmem [shape: bf16[128,128], index: 9, kind: input, shape index: {}]
  %s10 = inlined_call_operand.vmem [shape: f32[1,128], index: 10, kind: input, shape index: {}]
  %s11 = inlined_call_operand.vmem [shape: f32[8,128], index: 11, kind: output, shape index: {0}]
  %s12 = inlined_call_operand.vmem [shape: f32[8,128], index: 12, kind: output, shape index: {1}]
  %13 = xla_tuple %s11, %s12
  %s14 = sld [smem:[#allocation0]]
  $region93: #{rslogic2_forward.1} parent=0
    _
  %s16 = ssub.s32 1, %s14
  %s17 = scalar_select 0, %s16, %s14
  loop: start=0, step=1, limit=5
  $region2: #{rslogic2_forward.1} parent=0 // loop_pre_header
    _
  $region3: #{rslogic2_forward.1} parent=0 // loop_header
    %s19 = sphi 0, %s23
    %p20 = scmp.ge.s32.totalorder %s19, 5
    %s29 = sphi 0, %s31
    %s32 = sphi 0, %s29
    %s33 = sphi 0, %s32
    %s49 = sphi 0, %s33
    %s53 = sphi 0, %s53
    %s55 = sphi 0, %s53
    %s56 = sphi 0, %s55
    %s70 = sphi 0, %s56
    %s76 = sphi 0, %s78
    %s79 = sphi 0, %s76
    %s80 = sphi 0, %s79
    %s96 = sphi 0, %s80
    %s102 = sphi 0, %s104
    %s105 = sphi 0, %s102
    %s106 = sphi 0, %s105
    %s122 = sphi 0, %s106
    %s126 = sphi 0, %s126
    %s128 = sphi 0, %s126
    %s129 = sphi 0, %s128
    %s143 = sphi 0, %s129
    %s147 = sphi 0, %s147
    %s149 = sphi 0, %s147
    %s150 = sphi 0, %s149
    %s164 = sphi 0, %s150
    %s168 = sphi 0, %s168
    %s170 = sphi 0, %s168
    %s171 = sphi 0, %s170
    %s185 = sphi 0, %s171
    %s189 = sphi 0, %s189
    %s191 = sphi 0, %s189
    %s192 = sphi 0, %s191
    %s206 = sphi 0, %s192
    %s210 = sphi 0, %s210
    %s212 = sphi 0, %s210
    %s213 = sphi 0, %s212
    %s227 = sphi 0, %s213
    %s231 = sphi 0, %s231
    %s233 = sphi 0, %s231
    %s234 = sphi 0, %s233
    %s248 = sphi 0, %s234
    %s252 = sphi 0, %s252
    %s254 = sphi 0, %s252
    %s255 = sphi 0, %s254
    %s269 = sphi 0, %s255
    %s273 = sphi 0, %s273
    %s275 = sphi 0, %s273
    %s276 = sphi 0, %s275
    %s290 = sphi 0, %s276
    %s294 = sphi 0, %s294
    %s296 = sphi 0, %s294
    %s297 = sphi 0, %s296
    %s311 = sphi 0, %s297
  $region4: #{rslogic2_forward.1} parent=0 // loop_header_branch
    %22 = sbr.rel (%p20) target = $region8
  $region5: #{rslogic2_forward.1} parent=0 // loop_body
    %s24 = ssub.s32 %s19, 1
    %s25 = ssub.s32 %s19, 2
    %s26 = sadd.s32 %s19, 1
    %s27 = ssub.s32 %s19, %s26
    %p28 = scmp.eq.s32.totalorder %s27, 0
    %s30 = sadd.s32 %s29, 1
    %s31 = scalar_select %p28, %s29, %s30
    %p34 = pneg %p28
    %p35 = scmp.eq.s32.totalorder %s19, 2
    %p36 = por %p34, %p35
    %p37 = scmp.ne.s32.totalorder %s29, %s32
    %p38 = scmp.eq.s32.totalorder %s19, 0
    %p39 = por %p37, %p38
    %p40 = scmp.ne.s32.totalorder %s29, %s32
    %p41 = scmp.eq.s32.totalorder %s24, 2
    %p42 = por %p40, %p41
    %p43 = scmp.ne.s32.totalorder %s32, %s33
    %p44 = scmp.eq.s32.totalorder %s24, 0
    %p45 = por %p43, %p44
    %p46 = scmp.ne.s32.totalorder %s32, %s33
    %p47 = scmp.eq.s32.totalorder %s25, 2
    %p48 = por %p46, %p47
    %p50 = scmp.ne.s32.totalorder %s33, %s49
    %p51 = scmp.eq.s32.totalorder %s25, 0
    %p52 = por %p50, %p51
    %s54 = sadd.s32 %s53, 1
    %p57 = scmp.eq.s32.totalorder %s19, 2
    %p58 = scmp.ne.s32.totalorder %s53, %s55
    %p59 = scmp.eq.s32.totalorder %s19, 0
    %p60 = por %p58, %p59
    %p61 = scmp.ne.s32.totalorder %s53, %s55
    %p62 = scmp.eq.s32.totalorder %s24, 2
    %p63 = por %p61, %p62
    %p64 = scmp.ne.s32.totalorder %s55, %s56
    %p65 = scmp.eq.s32.totalorder %s24, 0
    %p66 = por %p64, %p65
    %p67 = scmp.ne.s32.totalorder %s55, %s56
    %p68 = scmp.eq.s32.totalorder %s25, 2
    %p69 = por %p67, %p68
    %p71 = scmp.ne.s32.totalorder %s56, %s70
    %p72 = scmp.eq.s32.totalorder %s25, 0
    %p73 = por %p71, %p72
    %s74 = ssub.s32 %s19, %s26
    %p75 = scmp.eq.s32.totalorder %s74, 0
    %s77 = sadd.s32 %s76, 1
    %s78 = scalar_select %p75, %s76, %s77
    %p81 = pneg %p75
    %p82 = scmp.eq.s32.totalorder %s19, 2
    %p83 = por %p81, %p82
    %p84 = scmp.ne.s32.totalorder %s76, %s79
    %p85 = scmp.eq.s32.totalorder %s19, 0
    %p86 = por %p84, %p85
    %p87 = scmp.ne.s32.totalorder %s76, %s79
    %p88 = scmp.eq.s32.totalorder %s24, 2
    %p89 = por %p87, %p88
    %p90 = scmp.ne.s32.totalorder %s79, %s80
    %p91 = scmp.eq.s32.totalorder %s24, 0
    %p92 = por %p90, %p91
    %p93 = scmp.ne.s32.totalorder %s79, %s80
    %p94 = scmp.eq.s32.totalorder %s25, 2
    %p95 = por %p93, %p94
    %p97 = scmp.ne.s32.totalorder %s80, %s96
    %p98 = scmp.eq.s32.totalorder %s25, 0
    %p99 = por %p97, %p98
    %s100 = ssub.s32 %s19, %s26
    %p101 = scmp.eq.s32.totalorder %s100, 0
    %s103 = sadd.s32 %s102, 1
    %s104 = scalar_select %p101, %s102, %s103
    %p107 = pneg %p101
    %p108 = scmp.eq.s32.totalorder %s19, 2
    %p109 = por %p107, %p108
    %p110 = scmp.ne.s32.totalorder %s102, %s105
    %p111 = scmp.eq.s32.totalorder %s19, 0
    %p112 = por %p110, %p111
    %p113 = scmp.ne.s32.totalorder %s102, %s105
    %p114 = scmp.eq.s32.totalorder %s24, 2
    %p115 = por %p113, %p114
    %p116 = scmp.ne.s32.totalorder %s105, %s106
    %p117 = scmp.eq.s32.totalorder %s24, 0
    %p118 = por %p116, %p117
    %p119 = scmp.ne.s32.totalorder %s105, %s106
    %p120 = scmp.eq.s32.totalorder %s25, 2
    %p121 = por %p119, %p120
    %p123 = scmp.ne.s32.totalorder %s106, %s122
    %p124 = scmp.eq.s32.totalorder %s25, 0
    %p125 = por %p123, %p124
    %s127 = sadd.s32 %s126, 1
    %p130 = scmp.eq.s32.totalorder %s19, 2
    %p131 = scmp.ne.s32.totalorder %s126, %s128
    %p132 = scmp.eq.s32.totalorder %s19, 0
    %p133 = por %p131, %p132
    %p134 = scmp.ne.s32.totalorder %s126, %s128
    %p135 = scmp.eq.s32.totalorder %s24, 2
    %p136 = por %p134, %p135
    %p137 = scmp.ne.s32.totalorder %s128, %s129
    %p138 = scmp.eq.s32.totalorder %s24, 0
    %p139 = por %p137, %p138
    %p140 = scmp.ne.s32.totalorder %s128, %s129
    %p141 = scmp.eq.s32.totalorder %s25, 2
    %p142 = por %p140, %p141
    %p144 = scmp.ne.s32.totalorder %s129, %s143
    %p145 = scmp.eq.s32.totalorder %s25, 0
    %p146 = por %p144, %p145
    %s148 = sadd.s32 %s147, 1
    %p151 = scmp.eq.s32.totalorder %s19, 2
    %p152 = scmp.ne.s32.totalorder %s147, %s149
    %p153 = scmp.eq.s32.totalorder %s19, 0
    %p154 = por %p152, %p153
    %p155 = scmp.ne.s32.totalorder %s147, %s149
    %p156 = scmp.eq.s32.totalorder %s24, 2
    %p157 = por %p155, %p156
    %p158 = scmp.ne.s32.totalorder %s149, %s150
    %p159 = scmp.eq.s32.totalorder %s24, 0
    %p160 = por %p158, %p159
    %p161 = scmp.ne.s32.totalorder %s149, %s150
    %p162 = scmp.eq.s32.totalorder %s25, 2
    %p163 = por %p161, %p162
    %p165 = scmp.ne.s32.totalorder %s150, %s164
    %p166 = scmp.eq.s32.totalorder %s25, 0
    %p167 = por %p165, %p166
    %s169 = sadd.s32 %s168, 1
    %p172 = scmp.eq.s32.totalorder %s19, 2
    %p173 = scmp.ne.s32.totalorder %s168, %s170
    %p174 = scmp.eq.s32.totalorder %s19, 0
    %p175 = por %p173, %p174
    %p176 = scmp.ne.s32.totalorder %s168, %s170
    %p177 = scmp.eq.s32.totalorder %s24, 2
    %p178 = por %p176, %p177
    %p179 = scmp.ne.s32.totalorder %s170, %s171
    %p180 = scmp.eq.s32.totalorder %s24, 0
    %p181 = por %p179, %p180
    %p182 = scmp.ne.s32.totalorder %s170, %s171
    %p183 = scmp.eq.s32.totalorder %s25, 2
    %p184 = por %p182, %p183
    %p186 = scmp.ne.s32.totalorder %s171, %s185
    %p187 = scmp.eq.s32.totalorder %s25, 0
    %p188 = por %p186, %p187
    %s190 = sadd.s32 %s189, 1
    %p193 = scmp.eq.s32.totalorder %s19, 2
    %p194 = scmp.ne.s32.totalorder %s189, %s191
    %p195 = scmp.eq.s32.totalorder %s19, 0
    %p196 = por %p194, %p195
    %p197 = scmp.ne.s32.totalorder %s189, %s191
    %p198 = scmp.eq.s32.totalorder %s24, 2
    %p199 = por %p197, %p198
    %p200 = scmp.ne.s32.totalorder %s191, %s192
    %p201 = scmp.eq.s32.totalorder %s24, 0
    %p202 = por %p200, %p201
    %p203 = scmp.ne.s32.totalorder %s191, %s192
    %p204 = scmp.eq.s32.totalorder %s25, 2
    %p205 = por %p203, %p204
    %p207 = scmp.ne.s32.totalorder %s192, %s206
    %p208 = scmp.eq.s32.totalorder %s25, 0
    %p209 = por %p207, %p208
    %s211 = sadd.s32 %s210, 1
    %p214 = scmp.eq.s32.totalorder %s19, 2
    %p215 = scmp.ne.s32.totalorder %s210, %s212
    %p216 = scmp.eq.s32.totalorder %s19, 0
    %p217 = por %p215, %p216
    %p218 = scmp.ne.s32.totalorder %s210, %s212
    %p219 = scmp.eq.s32.totalorder %s24, 2
    %p220 = por %p218, %p219
    %p221 = scmp.ne.s32.totalorder %s212, %s213
    %p222 = scmp.eq.s32.totalorder %s24, 0
    %p223 = por %p221, %p222
    %p224 = scmp.ne.s32.totalorder %s212, %s213
    %p225 = scmp.eq.s32.totalorder %s25, 2
    %p226 = por %p224, %p225
    %p228 = scmp.ne.s32.totalorder %s213, %s227
    %p229 = scmp.eq.s32.totalorder %s25, 0
    %p230 = por %p228, %p229
    %s232 = sadd.s32 %s231, 1
    %p235 = scmp.eq.s32.totalorder %s19, 2
    %p236 = scmp.ne.s32.totalorder %s231, %s233
    %p237 = scmp.eq.s32.totalorder %s19, 0
    %p238 = por %p236, %p237
    %p239 = scmp.ne.s32.totalorder %s231, %s233
    %p240 = scmp.eq.s32.totalorder %s24, 2
    %p241 = por %p239, %p240
    %p242 = scmp.ne.s32.totalorder %s233, %s234
    %p243 = scmp.eq.s32.totalorder %s24, 0
    %p244 = por %p242, %p243
    %p245 = scmp.ne.s32.totalorder %s233, %s234
    %p246 = scmp.eq.s32.totalorder %s25, 2
    %p247 = por %p245, %p246
    %p249 = scmp.ne.s32.totalorder %s234, %s248
    %p250 = scmp.eq.s32.totalorder %s25, 0
    %p251 = por %p249, %p250
    %s253 = sadd.s32 %s252, 1
    %p256 = scmp.eq.s32.totalorder %s19, 2
    %p257 = scmp.ne.s32.totalorder %s252, %s254
    %p258 = scmp.eq.s32.totalorder %s19, 0
    %p259 = por %p257, %p258
    %p260 = scmp.ne.s32.totalorder %s252, %s254
    %p261 = scmp.eq.s32.totalorder %s24, 2
    %p262 = por %p260, %p261
    %p263 = scmp.ne.s32.totalorder %s254, %s255
    %p264 = scmp.eq.s32.totalorder %s24, 0
    %p265 = por %p263, %p264
    %p266 = scmp.ne.s32.totalorder %s254, %s255
    %p267 = scmp.eq.s32.totalorder %s25, 2
    %p268 = por %p266, %p267
    %p270 = scmp.ne.s32.totalorder %s255, %s269
    %p271 = scmp.eq.s32.totalorder %s25, 0
    %p272 = por %p270, %p271
    %s274 = sadd.s32 %s273, 1
    %p277 = scmp.eq.s32.totalorder %s19, 2
    %p278 = scmp.ne.s32.totalorder %s273, %s275
    %p279 = scmp.eq.s32.totalorder %s19, 0
    %p280 = por %p278, %p279
    %p281 = scmp.ne.s32.totalorder %s273, %s275
    %p282 = scmp.eq.s32.totalorder %s24, 2
    %p283 = por %p281, %p282
    %p284 = scmp.ne.s32.totalorder %s275, %s276
    %p285 = scmp.eq.s32.totalorder %s24, 0
    %p286 = por %p284, %p285
    %p287 = scmp.ne.s32.totalorder %s275, %s276
    %p288 = scmp.eq.s32.totalorder %s25, 2
    %p289 = por %p287, %p288
    %p291 = scmp.ne.s32.totalorder %s276, %s290
    %p292 = scmp.eq.s32.totalorder %s25, 0
    %p293 = por %p291, %p292
    %s295 = sadd.s32 %s294, 1
    %p298 = scmp.eq.s32.totalorder %s19, 2
    %p299 = scmp.ne.s32.totalorder %s294, %s296
    %p300 = scmp.eq.s32.totalorder %s19, 0
    %p301 = por %p299, %p300
    %p302 = scmp.ne.s32.totalorder %s294, %s296
    %p303 = scmp.eq.s32.totalorder %s24, 2
    %p304 = por %p302, %p303
    %p305 = scmp.ne.s32.totalorder %s296, %s297
    %p306 = scmp.eq.s32.totalorder %s24, 0
    %p307 = por %p305, %p306
    %p308 = scmp.ne.s32.totalorder %s296, %s297
    %p309 = scmp.eq.s32.totalorder %s25, 2
    %p310 = por %p308, %p309
    %p312 = scmp.ne.s32.totalorder %s297, %s311
    %p313 = scmp.eq.s32.totalorder %s25, 0
    %p314 = por %p312, %p313
    %p315 = scmp.le.s32.totalorder 1, %s19
    %p316 = scmp.lt.s32.totalorder %s19, 4
    %p317 = pnand %p315, %p316
    %p318 = pneg %p317
    // Predicated region
    $region9: #{rslogic2_forward.1} parent=5 // pred_check
      _
    $region10: #{rslogic2_forward.1} parent=5 // pred_check_branch
      %320 = sbr.rel (%p317) target = $region12
    $region11: #{rslogic2_forward.1} parent=5 // pred_region
      %s321 = ssub.s32 %s19, 1
      // Predicated region
      $region13: #{rslogic2_forward.1} parent=11 // pred_check
        %p322 = pneg %p66
      $region14: #{rslogic2_forward.1} parent=11 // pred_check_branch
        %324 = sbr.rel (%p322) target = $region16
      $region15: #{rslogic2_forward.1} parent=11 // pred_region
        _
      $region16: #{rslogic2_forward.1} parent=11 // pred_fallthru
        _
      // Predicated region
      $region17: #{rslogic2_forward.1} parent=11 // pred_check
        %p325 = pneg %p139
      $region18: #{rslogic2_forward.1} parent=11 // pred_check_branch
        %327 = sbr.rel (%p325) target = $region20
      $region19: #{rslogic2_forward.1} parent=11 // pred_region
        _
      $region20: #{rslogic2_forward.1} parent=11 // pred_fallthru
        _
      // Predicated region
      $region21: #{rslogic2_forward.1} parent=11 // pred_check
        %p328 = pneg %p160
      $region22: #{rslogic2_forward.1} parent=11 // pred_check_branch
        %330 = sbr.rel (%p328) target = $region24
      $region23: #{rslogic2_forward.1} parent=11 // pred_region
        _
      $region24: #{rslogic2_forward.1} parent=11 // pred_fallthru
        _
      // Predicated region
      $region25: #{rslogic2_forward.1} parent=11 // pred_check
        %p331 = pneg %p181
      $region26: #{rslogic2_forward.1} parent=11 // pred_check_branch
        %333 = sbr.rel (%p331) target = $region28
      $region27: #{rslogic2_forward.1} parent=11 // pred_region
        _
      $region28: #{rslogic2_forward.1} parent=11 // pred_fallthru
        _
      // Predicated region
      $region29: #{rslogic2_forward.1} parent=11 // pred_check
        %p334 = pneg %p202
      $region30: #{rslogic2_forward.1} parent=11 // pred_check_branch
        %336 = sbr.rel (%p334) target = $region32
      $region31: #{rslogic2_forward.1} parent=11 // pred_region
        _
      $region32: #{rslogic2_forward.1} parent=11 // pred_fallthru
        _
      // Predicated region
      $region33: #{rslogic2_forward.1} parent=11 // pred_check
        %p337 = pneg %p223
      $region34: #{rslogic2_forward.1} parent=11 // pred_check_branch
        %339 = sbr.rel (%p337) target = $region36
      $region35: #{rslogic2_forward.1} parent=11 // pred_region
        _
      $region36: #{rslogic2_forward.1} parent=11 // pred_fallthru
        _
      // Predicated region
      $region37: #{rslogic2_forward.1} parent=11 // pred_check
        %p340 = pneg %p244
      $region38: #{rslogic2_forward.1} parent=11 // pred_check_branch
        %342 = sbr.rel (%p340) target = $region40
      $region39: #{rslogic2_forward.1} parent=11 // pred_region
        _
      $region40: #{rslogic2_forward.1} parent=11 // pred_fallthru
        _
      // Predicated region
      $region41: #{rslogic2_forward.1} parent=11 // pred_check
        %p343 = pneg %p265
      $region42: #{rslogic2_forward.1} parent=11 // pred_check_branch
        %345 = sbr.rel (%p343) target = $region44
      $region43: #{rslogic2_forward.1} parent=11 // pred_region
        _
      $region44: #{rslogic2_forward.1} parent=11 // pred_fallthru
        _
    $region12: #{rslogic2_forward.1} parent=5 // pred_fallthru
      _
    %p346 = scmp.lt.s32.totalorder %s19, 3
    // Predicated region
    $region45: #{rslogic2_forward.1} parent=5 // pred_check
      %p347 = pneg %p346
    $region46: #{rslogic2_forward.1} parent=5 // pred_check_branch
      %349 = sbr.rel (%p347) target = $region48
    $region47: #{rslogic2_forward.1} parent=5 // pred_region
      // Predicated region
      $region49: #{rslogic2_forward.1} parent=47 // pred_check
        %p350 = pneg %p39
      $region50: #{rslogic2_forward.1} parent=47 // pred_check_branch
        %352 = sbr.rel (%p350) target = $region52
      $region51: #{rslogic2_forward.1} parent=47 // pred_region
        %p353 = scmp.lt.s32.totalorder %s19, 2
        %s354 = scalar_select %p353, %s19, 2
        %s355 = scalar_lea.vmem %s0, %s354
      $region52: #{rslogic2_forward.1} parent=47 // pred_fallthru
        _
      // Predicated region
      $region53: #{rslogic2_forward.1} parent=47 // pred_check
        %p356 = pneg %p86
      $region54: #{rslogic2_forward.1} parent=47 // pred_check_branch
        %358 = sbr.rel (%p356) target = $region56
      $region55: #{rslogic2_forward.1} parent=47 // pred_region
        %s359 = smul.u32 16, %s19
        %p360 = scmp.lt.s32.totalorder %s359, 47
        %s361 = scalar_select %p360, %s359, 47
        %s362 = smul.addr %s361, 4
        %s363 = scalar_lea.vmem %s2, %s362
        %s364 = smul.u32 16, %s19
      $region56: #{rslogic2_forward.1} parent=47 // pred_fallthru
        _
      // Predicated region
      $region57: #{rslogic2_forward.1} parent=47 // pred_check
        %p365 = pneg %p112
      $region58: #{rslogic2_forward.1} parent=47 // pred_check_branch
        %367 = sbr.rel (%p365) target = $region60
      $region59: #{rslogic2_forward.1} parent=47 // pred_region
        %s368 = smul.u32 16, %s19
        %p369 = scmp.lt.s32.totalorder %s368, 47
        %s370 = scalar_select %p369, %s368, 47
        %s371 = smul.addr %s370, 4
        %s372 = scalar_lea.vmem %s3, %s371
        %s373 = smul.u32 16, %s19
      $region60: #{rslogic2_forward.1} parent=47 // pred_fallthru
        _
    $region48: #{rslogic2_forward.1} parent=5 // pred_fallthru
      _
    %p374 = scmp.le.s32.totalorder 1, %s19
    %p375 = scmp.lt.s32.totalorder %s19, 4
    %p376 = pnand %p374, %p375
    %p377 = pneg %p376
    // Predicated region
    $region61: #{rslogic2_forward.1} parent=5 // pred_check
      _
    $region62: #{rslogic2_forward.1} parent=5 // pred_check_branch
      %379 = sbr.rel (%p376) target = $region64
    $region63: #{rslogic2_forward.1} parent=5 // pred_region
      %s380 = ssub.s32 %s19, 1
      %p381 = scmp.lt.s32.totalorder %s24, 2
      %s382 = scalar_select %p381, %s24, 2
      %s383 = scalar_lea.vmem %s0, %s382
      %p384 = pneg %p45
      %p385 = pneg %p42
      %p386 = pneg %p66
      %p387 = pneg %p63
      %s388 = smul.u32 16, %s24
      %p389 = scmp.lt.s32.totalorder %s388, 47
      %s390 = scalar_select %p389, %s388, 47
      %s391 = smul.addr %s390, 4
      %s392 = scalar_lea.vmem %s2, %s391
      %p393 = pneg %p92
      %p394 = pneg %p89
      %s395 = smul.u32 16, %s24
      %p396 = scmp.lt.s32.totalorder %s395, 47
      %s397 = scalar_select %p396, %s395, 47
      %s398 = smul.addr %s397, 4
      %s399 = scalar_lea.vmem %s3, %s398
      %p400 = pneg %p118
      %p401 = pneg %p115
      %p402 = pneg %p139
      %p403 = pneg %p136
      %p404 = pneg %p160
      %p405 = pneg %p157
      %p406 = pneg %p181
      %p407 = pneg %p178
      %p408 = pneg %p202
      %p409 = pneg %p199
      %p410 = pneg %p223
      %p411 = pneg %p220
      %p412 = pneg %p244
      %p413 = pneg %p241
      %p414 = pneg %p265
      %p415 = pneg %p262
      %p416 = pneg %p286
      %p417 = pneg %p283
      %p418 = pneg %p307
      %p419 = pneg %p304
      %p420 = scmp.lt.s32.totalorder %s24, 2
      %s421 = scalar_select %p420, %s24, 2
      %s422 = scalar_lea.vmem %s0, %s421
      %s423 = smul.u32 16, %s24
      %p424 = scmp.lt.s32.totalorder %s423, 47
      %s425 = scalar_select %p424, %s423, 47
      %s426 = smul.addr %s425, 4
      %s427 = scalar_lea.vmem %s2, %s426
      %s428 = smul.u32 16, %s24
      %s429 = smul.u32 16, %s24
      %p430 = scmp.lt.s32.totalorder %s429, 47
      %s431 = scalar_select %p430, %s429, 47
      %s432 = smul.addr %s431, 4
      %s433 = scalar_lea.vmem %s3, %s432
      %s434 = smul.u32 16, %s24
      %p436 = scmp.eq.s32.totalorder %s24, 0
      // Predicated region
      $region65: #{rslogic2_forward.1} parent=63 // pred_check
        %p437 = pneg %p436
      $region66: #{rslogic2_forward.1} parent=63 // pred_check_branch
        %439 = sbr.rel (%p437) target = $region68
      $region67: #{rslogic2_forward.1} parent=63 // pred_region
        %440 = vst [vmem:[#allocation2] sm:$0xff] 0.0
        %vm441 = vcmask 7168
        %442 = vst.msk [vmem:[#allocation3] sm:$0xff] %vm441, 0.0
      $region68: #{rslogic2_forward.1} parent=63 // pred_fallthru
        _
      %v443 = vld [vmem:[%s6] sm:$0xf]
      %v444 = vld [vmem:[%s6 + $0x4] sm:$0xf]
      %v445 = vld [vmem:[%s6 + $0x8] sm:$0xf]
      %v446 = vld [vmem:[%s6 + $0xc] sm:$0xf]
      %v447 = vld [vmem:[%s6 + $0x10] sm:$0xf]
      %v448 = vld [vmem:[%s6 + $0x14] sm:$0xf]
      %v449 = vld [vmem:[%s6 + $0x18] sm:$0xf]
      %v450 = vld [vmem:[%s6 + $0x1c] sm:$0xf]
      %v451 = vld [vmem:[%s6 + $0x20] sm:$0xf]
      %v452 = vld [vmem:[%s6 + $0x24] sm:$0xf]
      %v453 = vld [vmem:[%s6 + $0x28] sm:$0xf]
      %v454 = vld [vmem:[%s6 + $0x2c] sm:$0xf]
      %v455 = vld [vmem:[%s6 + $0x30] sm:$0xf]
      %v456 = vld [vmem:[%s6 + $0x34] sm:$0xf]
      %v457 = vld [vmem:[%s6 + $0x38] sm:$0xf]
      %v458 = vld [vmem:[%s6 + $0x3c] sm:$0xf]
      %v459 = vld [vmem:[%s7] sm:$0xf]
      %v460 = vld [vmem:[%s7 + $0x4] sm:$0xf]
      %v461 = vld [vmem:[%s7 + $0x8] sm:$0xf]
      %v462 = vld [vmem:[%s7 + $0xc] sm:$0xf]
      %v463 = vld [vmem:[%s7 + $0x10] sm:$0xf]
      %v464 = vld [vmem:[%s7 + $0x14] sm:$0xf]
      %v465 = vld [vmem:[%s7 + $0x18] sm:$0xf]
      %v466 = vld [vmem:[%s7 + $0x1c] sm:$0xf]
      %v467 = vld [vmem:[%s7 + $0x20] sm:$0xf]
      %v468 = vld [vmem:[%s7 + $0x24] sm:$0xf]
      %v469 = vld [vmem:[%s7 + $0x28] sm:$0xf]
      %v470 = vld [vmem:[%s7 + $0x2c] sm:$0xf]
      %v471 = vld [vmem:[%s7 + $0x30] sm:$0xf]
      %v472 = vld [vmem:[%s7 + $0x34] sm:$0xf]
      %v473 = vld [vmem:[%s7 + $0x38] sm:$0xf]
      %v474 = vld [vmem:[%s7 + $0x3c] sm:$0xf]
      %v475 = vld [vmem:[%s9] sm:$0xf]
      %v476 = vld [vmem:[%s9 + $0x4] sm:$0xf]
      %v477 = vld [vmem:[%s9 + $0x8] sm:$0xf]
      %v478 = vld [vmem:[%s9 + $0xc] sm:$0xf]
      %v479 = vld [vmem:[%s9 + $0x10] sm:$0xf]
      %v480 = vld [vmem:[%s9 + $0x14] sm:$0xf]
      %v481 = vld [vmem:[%s9 + $0x18] sm:$0xf]
      %v482 = vld [vmem:[%s9 + $0x1c] sm:$0xf]
      %v483 = vld [vmem:[%s9 + $0x20] sm:$0xf]
      %v484 = vld [vmem:[%s9 + $0x24] sm:$0xf]
      %v485 = vld [vmem:[%s9 + $0x28] sm:$0xf]
      %v486 = vld [vmem:[%s9 + $0x2c] sm:$0xf]
      %v487 = vld [vmem:[%s9 + $0x30] sm:$0xf]
      %v488 = vld [vmem:[%s9 + $0x34] sm:$0xf]
      %v489 = vld [vmem:[%s9 + $0x38] sm:$0xf]
      %v490 = vld [vmem:[%s9 + $0x3c] sm:$0xf]
      %v491 = vld [vmem:[%s8] sm:$0x1]
      %v492 = vld [vmem:[%s10] sm:$0x1]
      %v493 = vld [vmem:[%s427] sm:$0xf]
      %v494 = vld [vmem:[%s427 + $0x4] sm:$0xf]
      %v495 = vld [vmem:[%s427 + $0x8] sm:$0xf]
      %v496 = vld [vmem:[%s427 + $0xc] sm:$0xf]
      %v497 = vld [vmem:[%s427 + $0x10] sm:$0xf]
      %v498 = vld [vmem:[%s427 + $0x14] sm:$0xf]
      %v499 = vld [vmem:[%s427 + $0x18] sm:$0xf]
      %v500 = vld [vmem:[%s427 + $0x1c] sm:$0xf]
      %v501 = vld [vmem:[%s427 + $0x20] sm:$0xf]
      %v502 = vld [vmem:[%s427 + $0x24] sm:$0xf]
      %v503 = vld [vmem:[%s427 + $0x28] sm:$0xf]
      %v504 = vld [vmem:[%s427 + $0x2c] sm:$0xf]
      %v505 = vld [vmem:[%s427 + $0x30] sm:$0xf]
      %v506 = vld [vmem:[%s427 + $0x34] sm:$0xf]
      %v507 = vld [vmem:[%s427 + $0x38] sm:$0xf]
      %v508 = vld [vmem:[%s427 + $0x3c] sm:$0xf]
      %v509 = vld [vmem:[%s433] sm:$0xf]
      %v510 = vld [vmem:[%s433 + $0x4] sm:$0xf]
      %v511 = vld [vmem:[%s433 + $0x8] sm:$0xf]
      %v512 = vld [vmem:[%s433 + $0xc] sm:$0xf]
      %v513 = vld [vmem:[%s433 + $0x10] sm:$0xf]
      %v514 = vld [vmem:[%s433 + $0x14] sm:$0xf]
      %v515 = vld [vmem:[%s433 + $0x18] sm:$0xf]
      %v516 = vld [vmem:[%s433 + $0x1c] sm:$0xf]
      %v517 = vld [vmem:[%s433 + $0x20] sm:$0xf]
      %v518 = vld [vmem:[%s433 + $0x24] sm:$0xf]
      %v519 = vld [vmem:[%s433 + $0x28] sm:$0xf]
      %v520 = vld [vmem:[%s433 + $0x2c] sm:$0xf]
      %v521 = vld [vmem:[%s433 + $0x30] sm:$0xf]
      %v522 = vld [vmem:[%s433 + $0x34] sm:$0xf]
      %v523 = vld [vmem:[%s433 + $0x38] sm:$0xf]
      %v524 = vld [vmem:[%s433 + $0x3c] sm:$0xf]
      %v541 = vunpack.c.l.b16 %v509
      %v542 = vunpack.c.l.b16 %v510
      %v543 = vunpack.c.l.b16 %v511
      %v544 = vunpack.c.l.b16 %v512
      %v545 = vunpack.c.l.b16 %v513
      %v546 = vunpack.c.l.b16 %v514
      %v547 = vunpack.c.l.b16 %v515
      %v548 = vunpack.c.l.b16 %v516
      %v549 = vunpack.c.l.b16 %v517
      %v550 = vunpack.c.l.b16 %v518
      %v551 = vunpack.c.l.b16 %v519
      %v552 = vunpack.c.l.b16 %v520
      %v553 = vunpack.c.l.b16 %v521
      %v554 = vunpack.c.l.b16 %v522
      %v555 = vunpack.c.l.b16 %v523
      %v556 = vunpack.c.l.b16 %v524
      %v557 = vpack.c.b16 %v542, %v541
      %v558 = vpack.c.b16 %v544, %v543
      %v559 = vpack.c.b16 %v546, %v545
      %v560 = vpack.c.b16 %v548, %v547
      %v561 = vpack.c.b16 %v550, %v549
      %v562 = vpack.c.b16 %v552, %v551
      %v563 = vpack.c.b16 %v554, %v553
      %v564 = vpack.c.b16 %v556, %v555
      %v589 = vunpack.c.l.b16 %v459
      %v590 = vunpack.c.l.b16 %v460
      %v591 = vunpack.c.l.b16 %v461
      %v592 = vunpack.c.l.b16 %v462
      %v593 = vunpack.c.l.b16 %v463
      %v594 = vunpack.c.l.b16 %v464
      %v595 = vunpack.c.l.b16 %v465
      %v596 = vunpack.c.l.b16 %v466
      %v597 = vunpack.c.l.b16 %v467
      %v598 = vunpack.c.l.b16 %v468
      %v599 = vunpack.c.l.b16 %v469
      %v600 = vunpack.c.l.b16 %v470
      %v601 = vunpack.c.l.b16 %v471
      %v602 = vunpack.c.l.b16 %v472
      %v603 = vunpack.c.l.b16 %v473
      %v604 = vunpack.c.l.b16 %v474
      %v605 = vpack.c.b16 %v590, %v589
      %v606 = vpack.c.b16 %v592, %v591
      %v607 = vpack.c.b16 %v594, %v593
      %v608 = vpack.c.b16 %v596, %v595
      %v609 = vpack.c.b16 %v598, %v597
      %v610 = vpack.c.b16 %v600, %v599
      %v611 = vpack.c.b16 %v602, %v601
      %v612 = vpack.c.b16 %v604, %v603
      %621 = vmatprep.subr.bf16.mxu0 0
      %622 = vmatpush1.bf16.msra.mxu0 %v605
      %623 = vmatprep.subr.bf16.mxu0 0
      %624 = vmatpush1.bf16.msra.mxu0 %v606
      %625 = vmatprep.subr.bf16.mxu0 0
      %626 = vmatpush1.bf16.msra.mxu0 %v607
      %627 = vmatprep.subr.bf16.mxu0 0
      %628 = vmatpush1.bf16.msra.mxu0 %v608
      %629 = vmatprep.subr.bf16.mxu0 0
      %630 = vmatpush1.bf16.msra.mxu0 %v609
      %631 = vmatprep.subr.bf16.mxu0 0
      %632 = vmatpush1.bf16.msra.mxu0 %v610
      %633 = vmatprep.subr.bf16.mxu0 0
      %634 = vmatpush1.bf16.msra.mxu0 %v611
      %635 = vmatprep.subr.bf16.mxu0 0
      %636 = vmatpush1.bf16.msra.mxu0 %v612
      %637 = vmatprep.subr.bf16.mxu0 0
      %638 = vmatpush1.bf16.msra.mxu0 0
      %639 = vmatprep.subr.bf16.mxu0 0
      %640 = vmatpush1.bf16.msra.mxu0 0
      %641 = vmatprep.subr.bf16.mxu0 0
      %642 = vmatpush1.bf16.msra.mxu0 0
      %643 = vmatprep.subr.bf16.mxu0 0
      %644 = vmatpush1.bf16.msra.mxu0 0
      %645 = vmatprep.subr.bf16.mxu0 0
      %646 = vmatpush1.bf16.msra.mxu0 0
      %647 = vmatprep.subr.bf16.mxu0 0
      %648 = vmatpush1.bf16.msra.mxu0 0
      %649 = vmatprep.subr.bf16.mxu0 0
      %650 = vmatpush1.bf16.msra.mxu0 0
      %651 = vmatprep.subr.bf16.mxu0 0
      %652 = vmatpush1.bf16.msra.mxu0 0
      %653 = vmatprep.mubr.bf16.mxu0 0
      %654 = vmatmul.mubr.bf16.gmra.mrb[0].mxu0 %v557
      %v655 = vpop.f32.mrb[0].mxu0
      %v656 = vadd.f32 0.0, %v655
      %v657 = vpop.f32.mrb[0].mxu0
      %v658 = vpop.f32.mrb[0].mxu0
      %v659 = vadd.f32 0.0, %v658
      %v660 = vpop.f32.mrb[0].mxu0
      %661 = vmatprep.mubr.bf16.mxu0 0
      %662 = vmatmul.mubr.bf16.gmra.mrb[0].mxu0 %v558
      %v663 = vpop.f32.mrb[0].mxu0
      %v664 = vadd.f32 0.0, %v663
      %v665 = vpop.f32.mrb[0].mxu0
      %v666 = vpop.f32.mrb[0].mxu0
      %v667 = vadd.f32 0.0, %v666
      %v668 = vpop.f32.mrb[0].mxu0
      %669 = vmatprep.mubr.bf16.mxu0 0
      %670 = vmatmul.mubr.bf16.gmra.mrb[0].mxu0 %v559
      %v671 = vpop.f32.mrb[0].mxu0
      %v672 = vadd.f32 0.0, %v671
      %v673 = vpop.f32.mrb[0].mxu0
      %v674 = vpop.f32.mrb[0].mxu0
      %v675 = vadd.f32 0.0, %v674
      %v676 = vpop.f32.mrb[0].mxu0
      %677 = vmatprep.mubr.bf16.mxu0 0
      %678 = vmatmul.mubr.bf16.gmra.mrb[0].mxu0 %v560
      %v679 = vpop.f32.mrb[0].mxu0
      %v680 = vadd.f32 0.0, %v679
      %v681 = vpop.f32.mrb[0].mxu0
      %v682 = vpop.f32.mrb[0].mxu0
      %v683 = vadd.f32 0.0, %v682
      %v684 = vpop.f32.mrb[0].mxu0
      %685 = vmatprep.mubr.bf16.mxu0 0
      %686 = vmatmul.mubr.bf16.gmra.mrb[0].mxu0 %v561
      %v687 = vpop.f32.mrb[0].mxu0
      %v688 = vadd.f32 0.0, %v687
      %v689 = vpop.f32.mrb[0].mxu0
      %v690 = vpop.f32.mrb[0].mxu0
      %v691 = vadd.f32 0.0, %v690
      %v692 = vpop.f32.mrb[0].mxu0
      %693 = vmatprep.mubr.bf16.mxu0 0
      %694 = vmatmul.mubr.bf16.gmra.mrb[0].mxu0 %v562
      %v695 = vpop.f32.mrb[0].mxu0
      %v696 = vadd.f32 0.0, %v695
      %v697 = vpop.f32.mrb[0].mxu0
      %v698 = vpop.f32.mrb[0].mxu0
      %v699 = vadd.f32 0.0, %v698
      %v700 = vpop.f32.mrb[0].mxu0
      %701 = vmatprep.mubr.bf16.mxu0 0
      %702 = vmatmul.mubr.bf16.gmra.mrb[0].mxu0 %v563
      %v703 = vpop.f32.mrb[0].mxu0
      %v704 = vadd.f32 0.0, %v703
      %v705 = vpop.f32.mrb[0].mxu0
      %v706 = vpop.f32.mrb[0].mxu0
      %v707 = vadd.f32 0.0, %v706
      %v708 = vpop.f32.mrb[0].mxu0
      %709 = vmatprep.mubr.bf16.mxu0 0
      %710 = vmatmul.mubr.bf16.gmra.mrb[0].mxu0 %v564
      %v711 = vpop.f32.mrb[0].mxu0
      %v712 = vadd.f32 0.0, %v711
      %v713 = vpop.f32.mrb[0].mxu0
      %v714 = vpop.f32.mrb[0].mxu0
      %v715 = vadd.f32 0.0, %v714
      %v716 = vpop.f32.mrb[0].mxu0
      %717 = vdwg.mxu0
      %v734 = vunpack.c.l.b16 %v493
      %v735 = vunpack.c.l.b16 %v494
      %v736 = vunpack.c.l.b16 %v495
      %v737 = vunpack.c.l.b16 %v496
      %v738 = vunpack.c.l.b16 %v497
      %v739 = vunpack.c.l.b16 %v498
      %v740 = vunpack.c.l.b16 %v499
      %v741 = vunpack.c.l.b16 %v500
      %v742 = vunpack.c.l.b16 %v501
      %v743 = vunpack.c.l.b16 %v502
      %v744 = vunpack.c.l.b16 %v503
      %v745 = vunpack.c.l.b16 %v504
      %v746 = vunpack.c.l.b16 %v505
      %v747 = vunpack.c.l.b16 %v506
      %v748 = vunpack.c.l.b16 %v507
      %v749 = vunpack.c.l.b16 %v508
      %v750 = vpack.c.b16 %v735, %v734
      %v751 = vpack.c.b16 %v737, %v736
      %v752 = vpack.c.b16 %v739, %v738
      %v753 = vpack.c.b16 %v741, %v740
      %v754 = vpack.c.b16 %v743, %v742
      %v755 = vpack.c.b16 %v745, %v744
      %v756 = vpack.c.b16 %v747, %v746
      %v757 = vpack.c.b16 %v749, %v748
      %v782 = vunpack.c.l.b16 %v443
      %v783 = vunpack.c.l.b16 %v444
      %v784 = vunpack.c.l.b16 %v445
      %v785 = vunpack.c.l.b16 %v446
      %v786 = vunpack.c.l.b16 %v447
      %v787 = vunpack.c.l.b16 %v448
      %v788 = vunpack.c.l.b16 %v449
      %v789 = vunpack.c.l.b16 %v450
      %v790 = vunpack.c.l.b16 %v451
      %v791 = vunpack.c.l.b16 %v452
      %v792 = vunpack.c.l.b16 %v453
      %v793 = vunpack.c.l.b16 %v454
      %v794 = vunpack.c.l.b16 %v455
      %v795 = vunpack.c.l.b16 %v456
      %v796 = vunpack.c.l.b16 %v457
      %v797 = vunpack.c.l.b16 %v458
      %v798 = vpack.c.b16 %v783, %v782
      %v799 = vpack.c.b16 %v785, %v784
      %v800 = vpack.c.b16 %v787, %v786
      %v801 = vpack.c.b16 %v789, %v788
      %v802 = vpack.c.b16 %v791, %v790
      %v803 = vpack.c.b16 %v793, %v792
      %v804 = vpack.c.b16 %v795, %v794
      %v805 = vpack.c.b16 %v797, %v796
      %814 = vmatprep.subr.bf16.mxu0 0
      %815 = vmatpush1.bf16.msra.mxu0 %v798
      %816 = vmatprep.subr.bf16.mxu0 0
      %817 = vmatpush1.bf16.msra.mxu0 %v799
      %818 = vmatprep.subr.bf16.mxu0 0
      %819 = vmatpush1.bf16.msra.mxu0 %v800
      %820 = vmatprep.subr.bf16.mxu0 0
      %821 = vmatpush1.bf16.msra.mxu0 %v801
      %822 = vmatprep.subr.bf16.mxu0 0
      %823 = vmatpush1.bf16.msra.mxu0 %v802
      %824 = vmatprep.subr.bf16.mxu0 0
      %825 = vmatpush1.bf16.msra.mxu0 %v803
      %826 = vmatprep.subr.bf16.mxu0 0
      %827 = vmatpush1.bf16.msra.mxu0 %v804
      %828 = vmatprep.subr.bf16.mxu0 0
      %829 = vmatpush1.bf16.msra.mxu0 %v805
      %830 = vmatprep.subr.bf16.mxu0 0
      %831 = vmatpush1.bf16.msra.mxu0 0
      %832 = vmatprep.subr.bf16.mxu0 0
      %833 = vmatpush1.bf16.msra.mxu0 0
      %834 = vmatprep.subr.bf16.mxu0 0
      %835 = vmatpush1.bf16.msra.mxu0 0
      %836 = vmatprep.subr.bf16.mxu0 0
      %837 = vmatpush1.bf16.msra.mxu0 0
      %838 = vmatprep.subr.bf16.mxu0 0
      %839 = vmatpush1.bf16.msra.mxu0 0
      %840 = vmatprep.subr.bf16.mxu0 0
      %841 = vmatpush1.bf16.msra.mxu0 0
      %842 = vmatprep.subr.bf16.mxu0 0
      %843 = vmatpush1.bf16.msra.mxu0 0
      %844 = vmatprep.subr.bf16.mxu0 0
      %845 = vmatpush1.bf16.msra.mxu0 0
      %846 = vmatprep.mubr.bf16.mxu0 0
      %847 = vmatmul.mubr.bf16.gmra.mrb[0].mxu0 %v750
      %v848 = vpop.f32.mrb[0].mxu0
      %v849 = vadd.f32 %v656, %v848
      %v850 = vpop.f32.mrb[0].mxu0
      %v851 = vpop.f32.mrb[0].mxu0
      %v852 = vadd.f32 %v659, %v851
      %v853 = vpop.f32.mrb[0].mxu0
      %854 = vmatprep.mubr.bf16.mxu0 0
      %855 = vmatmul.mubr.bf16.gmra.mrb[0].mxu0 %v751
      %v856 = vpop.f32.mrb[0].mxu0
      %v857 = vadd.f32 %v664, %v856
      %v858 = vpop.f32.mrb[0].mxu0
      %v859 = vpop.f32.mrb[0].mxu0
      %v860 = vadd.f32 %v667, %v859
      %v861 = vpop.f32.mrb[0].mxu0
      %862 = vmatprep.mubr.bf16.mxu0 0
      %863 = vmatmul.mubr.bf16.gmra.mrb[0].mxu0 %v752
      %v864 = vpop.f32.mrb[0].mxu0
      %v865 = vadd.f32 %v672, %v864
      %v866 = vpop.f32.mrb[0].mxu0
      %v867 = vpop.f32.mrb[0].mxu0
      %v868 = vadd.f32 %v675, %v867
      %v869 = vpop.f32.mrb[0].mxu0
      %870 = vmatprep.mubr.bf16.mxu0 0
      %871 = vmatmul.mubr.bf16.gmra.mrb[0].mxu0 %v753
      %v872 = vpop.f32.mrb[0].mxu0
      %v873 = vadd.f32 %v680, %v872
      %v874 = vpop.f32.mrb[0].mxu0
      %v875 = vpop.f32.mrb[0].mxu0
      %v876 = vadd.f32 %v683, %v875
      %v877 = vpop.f32.mrb[0].mxu0
      %878 = vmatprep.mubr.bf16.mxu0 0
      %879 = vmatmul.mubr.bf16.gmra.mrb[0].mxu0 %v754
      %v880 = vpop.f32.mrb[0].mxu0
      %v881 = vadd.f32 %v688, %v880
      %v882 = vpop.f32.mrb[0].mxu0
      %v883 = vpop.f32.mrb[0].mxu0
      %v884 = vadd.f32 %v691, %v883
      %v885 = vpop.f32.mrb[0].mxu0
      %886 = vmatprep.mubr.bf16.mxu0 0
      %887 = vmatmul.mubr.bf16.gmra.mrb[0].mxu0 %v755
      %v888 = vpop.f32.mrb[0].mxu0
      %v889 = vadd.f32 %v696, %v888
      %v890 = vpop.f32.mrb[0].mxu0
      %v891 = vpop.f32.mrb[0].mxu0
      %v892 = vadd.f32 %v699, %v891
      %v893 = vpop.f32.mrb[0].mxu0
      %894 = vmatprep.mubr.bf16.mxu0 0
      %895 = vmatmul.mubr.bf16.gmra.mrb[0].mxu0 %v756
      %v896 = vpop.f32.mrb[0].mxu0
      %v897 = vadd.f32 %v704, %v896
      %v898 = vpop.f32.mrb[0].mxu0
      %v899 = vpop.f32.mrb[0].mxu0
      %v900 = vadd.f32 %v707, %v899
      %v901 = vpop.f32.mrb[0].mxu0
      %902 = vmatprep.mubr.bf16.mxu0 0
      %903 = vmatmul.mubr.bf16.gmra.mrb[0].mxu0 %v757
      %v904 = vpop.f32.mrb[0].mxu0
      %v905 = vadd.f32 %v712, %v904
      %v906 = vpop.f32.mrb[0].mxu0
      %v907 = vpop.f32.mrb[0].mxu0
      %v908 = vadd.f32 %v715, %v907
      %v909 = vpop.f32.mrb[0].mxu0
      %910 = vdwg.mxu0
      %v912 = vlaneseq
      %v913 = vshrl.u32 %v912, 7
      %v914 = vsub.s32 0, %v913
      %v915 = vrot.slane %v491, %v914
      %v917 = vadd.f32 %v849, %v915
      %v918 = vadd.f32 %v852, %v915
      %v919 = vadd.f32 %v857, %v915
      %v920 = vadd.f32 %v860, %v915
      %v921 = vadd.f32 %v865, %v915
      %v922 = vadd.f32 %v868, %v915
      %v923 = vadd.f32 %v873, %v915
      %v924 = vadd.f32 %v876, %v915
      %v925 = vadd.f32 %v881, %v915
      %v926 = vadd.f32 %v884, %v915
      %v927 = vadd.f32 %v889, %v915
      %v928 = vadd.f32 %v892, %v915
      %v929 = vadd.f32 %v897, %v915
      %v930 = vadd.f32 %v900, %v915
      %v931 = vadd.f32 %v905, %v915
      %v932 = vadd.f32 %v908, %v915
      %vm933 = vcmp.gt.f32.partialorder %v917, 0.0
      %vm934 = vcmp.gt.f32.partialorder %v918, 0.0
      %vm935 = vcmp.gt.f32.partialorder %v919, 0.0
      %vm936 = vcmp.gt.f32.partialorder %v920, 0.0
      %vm937 = vcmp.gt.f32.partialorder %v921, 0.0
      %vm938 = vcmp.gt.f32.partialorder %v922, 0.0
      %vm939 = vcmp.gt.f32.partialorder %v923, 0.0
      %vm940 = vcmp.gt.f32.partialorder %v924, 0.0
      %vm941 = vcmp.gt.f32.partialorder %v925, 0.0
      %vm942 = vcmp.gt.f32.partialorder %v926, 0.0
      %vm943 = vcmp.gt.f32.partialorder %v927, 0.0
      %vm944 = vcmp.gt.f32.partialorder %v928, 0.0
      %vm945 = vcmp.gt.f32.partialorder %v929, 0.0
      %vm946 = vcmp.gt.f32.partialorder %v930, 0.0
      %vm947 = vcmp.gt.f32.partialorder %v931, 0.0
      %vm948 = vcmp.gt.f32.partialorder %v932, 0.0
      %v949 = vmul.f32 %v917, 0.01
      %v950 = vmul.f32 %v918, 0.01
      %v951 = vmul.f32 %v919, 0.01
      %v952 = vmul.f32 %v920, 0.01
      %v953 = vmul.f32 %v921, 0.01
      %v954 = vmul.f32 %v922, 0.01
      %v955 = vmul.f32 %v923, 0.01
      %v956 = vmul.f32 %v924, 0.01
      %v957 = vmul.f32 %v925, 0.01
      %v958 = vmul.f32 %v926, 0.01
      %v959 = vmul.f32 %v927, 0.01
      %v960 = vmul.f32 %v928, 0.01
      %v961 = vmul.f32 %v929, 0.01
      %v962 = vmul.f32 %v930, 0.01
      %v963 = vmul.f32 %v931, 0.01
      %v964 = vmul.f32 %v932, 0.01
      %v965 = vsel %vm933, %v917, %v949
      %v966 = vsel %vm934, %v918, %v950
      %v967 = vsel %vm935, %v919, %v951
      %v968 = vsel %vm936, %v920, %v952
      %v969 = vsel %vm937, %v921, %v953
      %v970 = vsel %vm938, %v922, %v954
      %v971 = vsel %vm939, %v923, %v955
      %v972 = vsel %vm940, %v924, %v956
      %v973 = vsel %vm941, %v925, %v957
      %v974 = vsel %vm942, %v926, %v958
      %v975 = vsel %vm943, %v927, %v959
      %v976 = vsel %vm944, %v928, %v960
      %v977 = vsel %vm945, %v929, %v961
      %v978 = vsel %vm946, %v930, %v962
      %v979 = vsel %vm947, %v931, %v963
      %v980 = vsel %vm948, %v932, %v964
      %v981 = vpack.c.bf16 %v966, %v965
      %v982 = vpack.c.bf16 %v968, %v967
      %v983 = vpack.c.bf16 %v970, %v969
      %v984 = vpack.c.bf16 %v972, %v971
      %v985 = vpack.c.bf16 %v974, %v973
      %v986 = vpack.c.bf16 %v976, %v975
      %v987 = vpack.c.bf16 %v978, %v977
      %v988 = vpack.c.bf16 %v980, %v979
      %v990 = vlaneseq
      %v991 = vshrl.u32 %v990, 7
      %v992 = vsub.s32 0, %v991
      %v993 = vrot.slane %v492, %v992
      %v1011 = vunpack.c.l.b16 %v475
      %v1012 = vunpack.c.l.b16 %v476
      %v1013 = vunpack.c.l.b16 %v477
      %v1014 = vunpack.c.l.b16 %v478
      %v1015 = vunpack.c.l.b16 %v479
      %v1016 = vunpack.c.l.b16 %v480
      %v1017 = vunpack.c.l.b16 %v481
      %v1018 = vunpack.c.l.b16 %v482
      %v1019 = vunpack.c.l.b16 %v483
      %v1020 = vunpack.c.l.b16 %v484
      %v1021 = vunpack.c.l.b16 %v485
      %v1022 = vunpack.c.l.b16 %v486
      %v1023 = vunpack.c.l.b16 %v487
      %v1024 = vunpack.c.l.b16 %v488
      %v1025 = vunpack.c.l.b16 %v489
      %v1026 = vunpack.c.l.b16 %v490
      %v1027 = vpack.c.b16 %v1012, %v1011
      %v1028 = vpack.c.b16 %v1014, %v1013
      %v1029 = vpack.c.b16 %v1016, %v1015
      %v1030 = vpack.c.b16 %v1018, %v1017
      %v1031 = vpack.c.b16 %v1020, %v1019
      %v1032 = vpack.c.b16 %v1022, %v1021
      %v1033 = vpack.c.b16 %v1024, %v1023
      %v1034 = vpack.c.b16 %v1026, %v1025
      %1043 = vmatprep.subr.bf16.mxu0 0
      %1044 = vmatpush1.bf16.msra.mxu0 %v1027
      %1045 = vmatprep.subr.bf16.mxu0 0
      %1046 = vmatpush1.bf16.msra.mxu0 %v1028
      %1047 = vmatprep.subr.bf16.mxu0 0
      %1048 = vmatpush1.bf16.msra.mxu0 %v1029
      %1049 = vmatprep.subr.bf16.mxu0 0
      %1050 = vmatpush1.bf16.msra.mxu0 %v1030
      %1051 = vmatprep.subr.bf16.mxu0 0
      %1052 = vmatpush1.bf16.msra.mxu0 %v1031
      %1053 = vmatprep.subr.bf16.mxu0 0
      %1054 = vmatpush1.bf16.msra.mxu0 %v1032
      %1055 = vmatprep.subr.bf16.mxu0 0
      %1056 = vmatpush1.bf16.msra.mxu0 %v1033
      %1057 = vmatprep.subr.bf16.mxu0 0
      %1058 = vmatpush1.bf16.msra.mxu0 %v1034
      %1059 = vmatprep.subr.bf16.mxu0 0
      %1060 = vmatpush1.bf16.msra.mxu0 0
      %1061 = vmatprep.subr.bf16.mxu0 0
      %1062 = vmatpush1.bf16.msra.mxu0 0
      %1063 = vmatprep.subr.bf16.mxu0 0
      %1064 = vmatpush1.bf16.msra.mxu0 0
      %1065 = vmatprep.subr.bf16.mxu0 0
      %1066 = vmatpush1.bf16.msra.mxu0 0
      %1067 = vmatprep.subr.bf16.mxu0 0
      %1068 = vmatpush1.bf16.msra.mxu0 0
      %1069 = vmatprep.subr.bf16.mxu0 0
      %1070 = vmatpush1.bf16.msra.mxu0 0
      %1071 = vmatprep.subr.bf16.mxu0 0
      %1072 = vmatpush1.bf16.msra.mxu0 0
      %1073 = vmatprep.subr.bf16.mxu0 0
      %1074 = vmatpush1.bf16.msra.mxu0 0
      %1075 = vmatprep.mubr.bf16.mxu0 0
      %1076 = vmatmul.mubr.bf16.gmra.mrb[0].mxu0 %v981
      %v1077 = vpop.f32.mrb[0].mxu0
      %v1078 = vadd.f32 %v993, %v1077
      %v1079 = vpop.f32.mrb[0].mxu0
      %v1080 = vpop.f32.mrb[0].mxu0
      %v1081 = vadd.f32 %v993, %v1080
      %v1082 = vpop.f32.mrb[0].mxu0
      %1083 = vmatprep.mubr.bf16.mxu0 0
      %1084 = vmatmul.mubr.bf16.gmra.mrb[0].mxu0 %v982
      %v1085 = vpop.f32.mrb[0].mxu0
      %v1086 = vadd.f32 %v993, %v1085
      %v1087 = vpop.f32.mrb[0].mxu0
      %v1088 = vpop.f32.mrb[0].mxu0
      %v1089 = vadd.f32 %v993, %v1088
      %v1090 = vpop.f32.mrb[0].mxu0
      %1091 = vmatprep.mubr.bf16.mxu0 0
      %1092 = vmatmul.mubr.bf16.gmra.mrb[0].mxu0 %v983
      %v1093 = vpop.f32.mrb[0].mxu0
      %v1094 = vadd.f32 %v993, %v1093
      %v1095 = vpop.f32.mrb[0].mxu0
      %v1096 = vpop.f32.mrb[0].mxu0
      %v1097 = vadd.f32 %v993, %v1096
      %v1098 = vpop.f32.mrb[0].mxu0
      %1099 = vmatprep.mubr.bf16.mxu0 0
      %1100 = vmatmul.mubr.bf16.gmra.mrb[0].mxu0 %v984
      %v1101 = vpop.f32.mrb[0].mxu0
      %v1102 = vadd.f32 %v993, %v1101
      %v1103 = vpop.f32.mrb[0].mxu0
      %v1104 = vpop.f32.mrb[0].mxu0
      %v1105 = vadd.f32 %v993, %v1104
      %v1106 = vpop.f32.mrb[0].mxu0
      %1107 = vmatprep.mubr.bf16.mxu0 0
      %1108 = vmatmul.mubr.bf16.gmra.mrb[0].mxu0 %v985
      %v1109 = vpop.f32.mrb[0].mxu0
      %v1110 = vadd.f32 %v993, %v1109
      %v1111 = vpop.f32.mrb[0].mxu0
      %v1112 = vpop.f32.mrb[0].mxu0
      %v1113 = vadd.f32 %v993, %v1112
      %v1114 = vpop.f32.mrb[0].mxu0
      %1115 = vmatprep.mubr.bf16.mxu0 0
      %1116 = vmatmul.mubr.bf16.gmra.mrb[0].mxu0 %v986
      %v1117 = vpop.f32.mrb[0].mxu0
      %v1118 = vadd.f32 %v993, %v1117
      %v1119 = vpop.f32.mrb[0].mxu0
      %v1120 = vpop.f32.mrb[0].mxu0
      %v1121 = vadd.f32 %v993, %v1120
      %v1122 = vpop.f32.mrb[0].mxu0
      %1123 = vmatprep.mubr.bf16.mxu0 0
      %1124 = vmatmul.mubr.bf16.gmra.mrb[0].mxu0 %v987
      %v1125 = vpop.f32.mrb[0].mxu0
      %v1126 = vadd.f32 %v993, %v1125
      %v1127 = vpop.f32.mrb[0].mxu0
      %v1128 = vpop.f32.mrb[0].mxu0
      %v1129 = vadd.f32 %v993, %v1128
      %v1130 = vpop.f32.mrb[0].mxu0
      %1131 = vmatprep.mubr.bf16.mxu0 0
      %1132 = vmatmul.mubr.bf16.gmra.mrb[0].mxu0 %v988
      %v1133 = vpop.f32.mrb[0].mxu0
      %v1134 = vadd.f32 %v993, %v1133
      %v1135 = vpop.f32.mrb[0].mxu0
      %v1136 = vpop.f32.mrb[0].mxu0
      %v1137 = vadd.f32 %v993, %v1136
      %v1138 = vpop.f32.mrb[0].mxu0
      %1139 = vdwg.mxu0
      %v1140 = vld [vmem:[%s1] sm:$0xff]
      %v1141 = vld [vmem:[%s422] sm:$0x1]
      %1142 = vset.pattern.permute.xlu0 0
      %1143 = vperm.xlu0 %1142, %v1140
      %v1144 = vpop.permute.xlu0 %1143
      %v1145 = vlaneseq
      %v1146 = vshrl.u32 %v1145, 7
      %v1147 = vsub.s32 0, %v1146
      %v1148 = vrot.slane %v1141, %v1147
      %vm1149 = vcmp.eq.s32.totalorder %v1144, %v1148
      %v1150 = vld [vmem:[#allocation3] sm:$0xff]
      %v1151 = vsel %vm1149, 1, 0
      %v1152 = vcvt.s32.f32 %v1151
      %1153 = vadd.xlane.f32.xlu0 %v1152
      %v1154 = vpop.xlane.xlu0 %1153
      %v1155 = vadd.f32 %v1150, %v1154
      %vm1156 = vcmask 7168
      %1157 = vst.msk [vmem:[#allocation3] sm:$0xff] %vm1156, %v1155
      %v1158 = vld [vmem:[#allocation2] sm:$0xff]
      %v1159 = vpack.c.bf16 %v1152, %v1152
      %v1160 = vpack.c.bf16 %v1081, %v1078
      %v1161 = vpack.c.bf16 %v1089, %v1086
      %v1162 = vpack.c.bf16 %v1097, %v1094
      %v1163 = vpack.c.bf16 %v1105, %v1102
      %v1164 = vpack.c.bf16 %v1113, %v1110
      %v1165 = vpack.c.bf16 %v1121, %v1118
      %v1166 = vpack.c.bf16 %v1129, %v1126
      %v1167 = vpack.c.bf16 %v1137, %v1134
      %1168 = vmatprep.subr.bf16.mxu0 0
      %1169 = vmatpush1.bf16.msra.mxu0 %v1160
      %1170 = vmatprep.subr.bf16.mxu0 0
      %1171 = vmatpush1.bf16.msra.mxu0 %v1161
      %1172 = vmatprep.subr.bf16.mxu0 0
      %1173 = vmatpush1.bf16.msra.mxu0 %v1162
      %1174 = vmatprep.subr.bf16.mxu0 0
      %1175 = vmatpush1.bf16.msra.mxu0 %v1163
      %1176 = vmatprep.subr.bf16.mxu0 0
      %1177 = vmatpush1.bf16.msra.mxu0 %v1164
      %1178 = vmatprep.subr.bf16.mxu0 0
      %1179 = vmatpush1.bf16.msra.mxu0 %v1165
      %1180 = vmatprep.subr.bf16.mxu0 0
      %1181 = vmatpush1.bf16.msra.mxu0 %v1166
      %1182 = vmatprep.subr.bf16.mxu0 0
      %1183 = vmatpush1.bf16.msra.mxu0 %v1167
      %1184 = vmatprep.subr.bf16.mxu0 0
      %1185 = vmatpush1.bf16.msra.mxu0 0
      %1186 = vmatprep.subr.bf16.mxu0 0
      %1187 = vmatpush1.bf16.msra.mxu0 0
      %1188 = vmatprep.subr.bf16.mxu0 0
      %1189 = vmatpush1.bf16.msra.mxu0 0
      %1190 = vmatprep.subr.bf16.mxu0 0
      %1191 = vmatpush1.bf16.msra.mxu0 0
      %1192 = vmatprep.subr.bf16.mxu0 0
      %1193 = vmatpush1.bf16.msra.mxu0 0
      %1194 = vmatprep.subr.bf16.mxu0 0
      %1195 = vmatpush1.bf16.msra.mxu0 0
      %1196 = vmatprep.subr.bf16.mxu0 0
      %1197 = vmatpush1.bf16.msra.mxu0 0
      %1198 = vmatprep.subr.bf16.mxu0 0
      %1199 = vmatpush1.bf16.msra.mxu0 0
      %1200 = vmatprep.mubr.bf16.mxu0 0
      %1201 = vmatmul.mubr.bf16.gmra.mrb[0].mxu0 %v1159
      %v1202 = vpop.f32.mrb[0].mxu0
      %v1203 = vadd.f32 0.0, %v1202
      %v1204 = vpop.f32.mrb[0].mxu0
      %v1205 = vpop.f32.mrb[0].mxu0
      %v1206 = vpop.f32.mrb[0].mxu0
      %1207 = vdwg.mxu0
      %v1208 = vadd.f32 %v1158, %v1203
      %1209 = vst [vmem:[#allocation2] sm:$0xff] %v1208
      %p1210 = scmp.eq.s32.totalorder %s24, 2
      // Predicated region
      $region69: #{rslogic2_forward.1} parent=63 // pred_check
        %p1211 = pneg %p1210
      $region70: #{rslogic2_forward.1} parent=63 // pred_check_branch
        %1213 = sbr.rel (%p1211) target = $region72
      $region71: #{rslogic2_forward.1} parent=63 // pred_region
        %v1214 = vld [vmem:[%s4] sm:$0xf]
        %v1215 = vld [vmem:[%s5] sm:$0xf]
        %1216 = vmatprep.subr.bf16.mxu0 0
        %1217 = vmatpush1.bf16.msra.mxu0 %v605
        %1218 = vmatprep.subr.bf16.mxu0 0
        %1219 = vmatpush1.bf16.msra.mxu0 %v606
        %1220 = vmatprep.subr.bf16.mxu0 0
        %1221 = vmatpush1.bf16.msra.mxu0 %v607
        %1222 = vmatprep.subr.bf16.mxu0 0
        %1223 = vmatpush1.bf16.msra.mxu0 %v608
        %1224 = vmatprep.subr.bf16.mxu0 0
        %1225 = vmatpush1.bf16.msra.mxu0 %v609
        %1226 = vmatprep.subr.bf16.mxu0 0
        %1227 = vmatpush1.bf16.msra.mxu0 %v610
        %1228 = vmatprep.subr.bf16.mxu0 0
        %1229 = vmatpush1.bf16.msra.mxu0 %v611
        %1230 = vmatprep.subr.bf16.mxu0 0
        %1231 = vmatpush1.bf16.msra.mxu0 %v612
        %1232 = vmatprep.subr.bf16.mxu0 0
        %1233 = vmatpush1.bf16.msra.mxu0 0
        %1234 = vmatprep.subr.bf16.mxu0 0
        %1235 = vmatpush1.bf16.msra.mxu0 0
        %1236 = vmatprep.subr.bf16.mxu0 0
        %1237 = vmatpush1.bf16.msra.mxu0 0
        %1238 = vmatprep.subr.bf16.mxu0 0
        %1239 = vmatpush1.bf16.msra.mxu0 0
        %1240 = vmatprep.subr.bf16.mxu0 0
        %1241 = vmatpush1.bf16.msra.mxu0 0
        %1242 = vmatprep.subr.bf16.mxu0 0
        %1243 = vmatpush1.bf16.msra.mxu0 0
        %1244 = vmatprep.subr.bf16.mxu0 0
        %1245 = vmatpush1.bf16.msra.mxu0 0
        %1246 = vmatprep.subr.bf16.mxu0 0
        %1247 = vmatpush1.bf16.msra.mxu0 0
        %1248 = vmatprep.mubr.bf16.mxu0 0
        %1249 = vmatmul.mubr.bf16.gmra.mrb[0].mxu0 %v1215
        %v1250 = vpop.f32.mrb[0].mxu0
        %v1251 = vadd.f32 0.0, %v1250
        %v1252 = vpop.f32.mrb[0].mxu0
        %v1253 = vpop.f32.mrb[0].mxu0
        %v1254 = vpop.f32.mrb[0].mxu0
        %1255 = vdwg.mxu0
        %1256 = vmatprep.subr.bf16.mxu0 0
        %1257 = vmatpush1.bf16.msra.mxu0 %v798
        %1258 = vmatprep.subr.bf16.mxu0 0
        %1259 = vmatpush1.bf16.msra.mxu0 %v799
        %1260 = vmatprep.subr.bf16.mxu0 0
        %1261 = vmatpush1.bf16.msra.mxu0 %v800
        %1262 = vmatprep.subr.bf16.mxu0 0
        %1263 = vmatpush1.bf16.msra.mxu0 %v801
        %1264 = vmatprep.subr.bf16.mxu0 0
        %1265 = vmatpush1.bf16.msra.mxu0 %v802
        %1266 = vmatprep.subr.bf16.mxu0 0
        %1267 = vmatpush1.bf16.msra.mxu0 %v803
        %1268 = vmatprep.subr.bf16.mxu0 0
        %1269 = vmatpush1.bf16.msra.mxu0 %v804
        %1270 = vmatprep.subr.bf16.mxu0 0
        %1271 = vmatpush1.bf16.msra.mxu0 %v805
        %1272 = vmatprep.subr.bf16.mxu0 0
        %1273 = vmatpush1.bf16.msra.mxu0 0
        %1274 = vmatprep.subr.bf16.mxu0 0
        %1275 = vmatpush1.bf16.msra.mxu0 0
        %1276 = vmatprep.subr.bf16.mxu0 0
        %1277 = vmatpush1.bf16.msra.mxu0 0
        %1278 = vmatprep.subr.bf16.mxu0 0
        %1279 = vmatpush1.bf16.msra.mxu0 0
        %1280 = vmatprep.subr.bf16.mxu0 0
        %1281 = vmatpush1.bf16.msra.mxu0 0
        %1282 = vmatprep.subr.bf16.mxu0 0
        %1283 = vmatpush1.bf16.msra.mxu0 0
        %1284 = vmatprep.subr.bf16.mxu0 0
        %1285 = vmatpush1.bf16.msra.mxu0 0
        %1286 = vmatprep.subr.bf16.mxu0 0
        %1287 = vmatpush1.bf16.msra.mxu0 0
        %1288 = vmatprep.mubr.bf16.mxu0 0
        %1289 = vmatmul.mubr.bf16.gmra.mrb[0].mxu0 %v1214
        %v1290 = vpop.f32.mrb[0].mxu0
        %v1291 = vadd.f32 %v1251, %v1290
        %v1292 = vpop.f32.mrb[0].mxu0
        %v1293 = vpop.f32.mrb[0].mxu0
        %v1294 = vpop.f32.mrb[0].mxu0
        %1295 = vdwg.mxu0
        %v1296 = vadd.f32 %v1291, %v915
        %vm1297 = vcmp.gt.f32.partialorder %v1296, 0.0
        %v1298 = vmul.f32 %v1296, 0.01
        %v1299 = vsel %vm1297, %v1296, %v1298
        %v1300 = vpack.c.bf16 %v1299, %v1299
        %1301 = vmatprep.subr.bf16.mxu0 0
        %1302 = vmatpush1.bf16.msra.mxu0 %v1027
        %1303 = vmatprep.subr.bf16.mxu0 0
        %1304 = vmatpush1.bf16.msra.mxu0 %v1028
        %1305 = vmatprep.subr.bf16.mxu0 0
        %1306 = vmatpush1.bf16.msra.mxu0 %v1029
        %1307 = vmatprep.subr.bf16.mxu0 0
        %1308 = vmatpush1.bf16.msra.mxu0 %v1030
        %1309 = vmatprep.subr.bf16.mxu0 0
        %1310 = vmatpush1.bf16.msra.mxu0 %v1031
        %1311 = vmatprep.subr.bf16.mxu0 0
        %1312 = vmatpush1.bf16.msra.mxu0 %v1032
        %1313 = vmatprep.subr.bf16.mxu0 0
        %1314 = vmatpush1.bf16.msra.mxu0 %v1033
        %1315 = vmatprep.subr.bf16.mxu0 0
        %1316 = vmatpush1.bf16.msra.mxu0 %v1034
        %1317 = vmatprep.subr.bf16.mxu0 0
        %1318 = vmatpush1.bf16.msra.mxu0 0
        %1319 = vmatprep.subr.bf16.mxu0 0
        %1320 = vmatpush1.bf16.msra.mxu0 0
        %1321 = vmatprep.subr.bf16.mxu0 0
        %1322 = vmatpush1.bf16.msra.mxu0 0
        %1323 = vmatprep.subr.bf16.mxu0 0
        %1324 = vmatpush1.bf16.msra.mxu0 0
        %1325 = vmatprep.subr.bf16.mxu0 0
        %1326 = vmatpush1.bf16.msra.mxu0 0
        %1327 = vmatprep.subr.bf16.mxu0 0
        %1328 = vmatpush1.bf16.msra.mxu0 0
        %1329 = vmatprep.subr.bf16.mxu0 0
        %1330 = vmatpush1.bf16.msra.mxu0 0
        %1331 = vmatprep.subr.bf16.mxu0 0
        %1332 = vmatpush1.bf16.msra.mxu0 0
        %1333 = vmatprep.mubr.bf16.mxu0 0
        %1334 = vmatmul.mubr.bf16.gmra.mrb[0].mxu0 %v1300
        %v1335 = vpop.f32.mrb[0].mxu0
        %v1336 = vadd.f32 %v993, %v1335
        %v1337 = vpop.f32.mrb[0].mxu0
        %v1338 = vpop.f32.mrb[0].mxu0
        %v1339 = vpop.f32.mrb[0].mxu0
        %1340 = vdwg.mxu0
        %1341 = vst [vmem:[%s12] sm:$0xff] %v1336
        %v1342 = vld [vmem:[#allocation3] sm:$0xff]
        %v1343 = vrcp.pop %v1342
        %v1344 = vld [vmem:[#allocation2] sm:$0xff]
        %1346 = vset.pattern.permute.xlu0 0
        %1347 = vperm.xlu0 %1346, %v1343
        %v1348 = vpop.permute.xlu0 %1347
        %v1350 = vmul.f32 %v1344, %v1348
        %1351 = vst [vmem:[%s11] sm:$0xff] %v1350
      $region72: #{rslogic2_forward.1} parent=63 // pred_fallthru
        _
      // Predicated region
      $region73: #{rslogic2_forward.1} parent=63 // pred_check
        %p1352 = pneg %p283
      $region74: #{rslogic2_forward.1} parent=63 // pred_check_branch
        %1354 = sbr.rel (%p1352) target = $region76
      $region75: #{rslogic2_forward.1} parent=63 // pred_region
        _
      $region76: #{rslogic2_forward.1} parent=63 // pred_fallthru
        _
      // Predicated region
      $region77: #{rslogic2_forward.1} parent=63 // pred_check
        %p1355 = pneg %p304
      $region78: #{rslogic2_forward.1} parent=63 // pred_check_branch
        %1357 = sbr.rel (%p1355) target = $region80
      $region79: #{rslogic2_forward.1} parent=63 // pred_region
        _
      $region80: #{rslogic2_forward.1} parent=63 // pred_fallthru
        _
      // Predicated region
      $region81: #{rslogic2_forward.1} parent=63 // pred_check
        %p1358 = pneg %p283
      $region82: #{rslogic2_forward.1} parent=63 // pred_check_branch
        %1360 = sbr.rel (%p1358) target = $region84
      $region83: #{rslogic2_forward.1} parent=63 // pred_region
        _
      $region84: #{rslogic2_forward.1} parent=63 // pred_fallthru
        _
      // Predicated region
      $region85: #{rslogic2_forward.1} parent=63 // pred_check
        %p1361 = pneg %p304
      $region86: #{rslogic2_forward.1} parent=63 // pred_check_branch
        %1363 = sbr.rel (%p1361) target = $region88
      $region87: #{rslogic2_forward.1} parent=63 // pred_region
        _
      $region88: #{rslogic2_forward.1} parent=63 // pred_fallthru
        _
    $region64: #{rslogic2_forward.1} parent=5 // pred_fallthru
      _
    %p1364 = scmp.le.s32.totalorder 2, %s19
    // Predicated region
    $region89: #{rslogic2_forward.1} parent=5 // pred_check
      %p1365 = pneg %p1364
    $region90: #{rslogic2_forward.1} parent=5 // pred_check_branch
      %1367 = sbr.rel (%p1365) target = $region92
    $region91: #{rslogic2_forward.1} parent=5 // pred_region
      %s1368 = ssub.s32 %s19, 2
    $region92: #{rslogic2_forward.1} parent=5 // pred_fallthru
      _
  $region6: #{rslogic2_forward.1} parent=0 // loop_footer
    %s23 = sadd.s32 1, %s19
  $region7: #{rslogic2_forward.1} parent=0 // loop_footer_branch
    %18 = sbr.rel target = $region3
  $region8: #{rslogic2_forward.1} parent=0 // loop_exit
    _

</llo_original>
